<compile_context>
chip_gen: v6e
topology: v6e:2x2x1
jax: 0.10.0
libtpu: 0.0.40
codegen_flags: <defaults>
</compile_context>

<pallas_src>
import math
from functools import partial

import jax
import jax.numpy as jnp
from jax.experimental import pallas as pl

# ----- tiny BERT config (small shapes, consistent with the module's forward) -----
VOCAB = 64
HIDDEN = 32
N_HEADS = 2
HEAD_DIM = HIDDEN // N_HEADS
INTERMEDIATE = 64
N_LAYERS = 2
MAX_POS = 16
TYPE_VOCAB = 2
LN_EPS = 1e-12


# ---------------------------------------------------------------------------
# Fused encoder kernel: embeddings LN -> N_LAYERS transformer layers -> CLS rows
# ---------------------------------------------------------------------------
def _encoder_kernel(emb_ref, mask_ref, eg_ref, eb_ref,
                    wqkv_ref, bqkv_ref, wao_ref, bao_ref, ln1g_ref, ln1b_ref,
                    wi_ref, bi_ref, wff_ref, bff_ref, ln2g_ref, ln2b_ref,
                    cls_ref, *, batch, seq):
    def layernorm(x, g, b):
        mu = jnp.mean(x, axis=-1, keepdims=True)
        var = jnp.mean(jnp.square(x - mu), axis=-1, keepdims=True)
        return (x - mu) * jax.lax.rsqrt(var + LN_EPS) * g + b

    mask = mask_ref[...]                      # (B*S, B*S) additive mask (0 or -10000)
    h = layernorm(emb_ref[...], eg_ref[...], eb_ref[...])   # (B*S, H)

    n_layers = wqkv_ref.shape[0]
    for layer in range(n_layers):             # static unroll (tiny model)
        x = h

        # Fused Q/K/V projection: (B*S, H) @ (H, 3H).  1/sqrt(head_dim) already
        # folded into the Q columns of wqkv.
        qkv = jnp.dot(x, wqkv_ref[layer],
                      preferred_element_type=jnp.float32) + bqkv_ref[layer]

        wao = wao_ref[layer]                  # (H, H) attention output projection
        attn = jnp.zeros_like(x)              # (B*S, H) accumulated over heads
        for hh in range(N_HEADS):             # static unroll over heads
            lo = hh * HEAD_DIM
            q = qkv[:, lo:lo + HEAD_DIM]                              # (B*S, dh)
            k = qkv[:, HIDDEN + lo:HIDDEN + lo + HEAD_DIM]            # (B*S, dh)
            v = qkv[:, 2 * HIDDEN + lo:2 * HIDDEN + lo + HEAD_DIM]    # (B*S, dh)

            # scores over ALL rows; cross-batch / padded keys carry -10000 and
            # vanish after exp, reproducing per-batch masked softmax exactly.
            s = jax.lax.dot_general(q, k, (((1,), (1,)), ((), ())),
                                    preferred_element_type=jnp.float32)
            s = s + mask
            s = s - jnp.max(s, axis=-1, keepdims=True)
            p = jnp.exp(s)
            p = p * pl.reciprocal(jnp.sum(p, axis=-1, keepdims=True), approx=True)

            ctx = jnp.dot(p, v, preferred_element_type=jnp.float32)   # (B*S, dh)
            # Per-head slice of the output projection; sum over heads == concat+matmul.
            attn = attn + jnp.dot(ctx, wao[lo:lo + HEAD_DIM, :],
                                  preferred_element_type=jnp.float32)

        attn = attn + bao_ref[layer]
        h1 = layernorm(attn + x, ln1g_ref[layer], ln1b_ref[layer])

        # TODO(synk): HF BERT default "gelu" is erf-based; using tanh-approx GELU
        # for guaranteed Mosaic lowering (matches the common "gelu_new").
        inter = jax.nn.gelu(
            jnp.dot(h1, wi_ref[layer], preferred_element_type=jnp.float32)
            + bi_ref[layer], approximate=True)
        ffn = jnp.dot(inter, wff_ref[layer],
                      preferred_element_type=jnp.float32) + bff_ref[layer]
        h = layernorm(ffn + h1, ln2g_ref[layer], ln2b_ref[layer])

    # Only the CLS rows leave VMEM.
    for b in range(batch):
        cls_ref[b:b + 1, :] = h[b * seq:b * seq + 1, :]


# ---------------------------------------------------------------------------
# Wrapper: embedding gather + mask build (plain-JAX glue) + one pallas_call
# ---------------------------------------------------------------------------
def _bert_encode_impl(params, input_ids, attention_mask):
    B, S = input_ids.shape
    we = jnp.take(params["word_emb"], input_ids, axis=0)          # (B, S, H)
    pe = params["pos_emb"][:S][None, :, :]                        # (1, S, H)
    te = params["type_emb"][0][None, None, :]                     # token_type_ids = 0
    emb = (we + pe + te).astype(jnp.float32).reshape(B * S, HIDDEN)

    # (B*S, B*S) additive mask: 0 where (same batch AND key not padded), else -10000.
    batch_ids = jnp.repeat(jnp.arange(B), S)
    same_batch = batch_ids[:, None] == batch_ids[None, :]
    key_valid = attention_mask.reshape(B * S) > 0
    mask2d = jnp.where(same_batch & key_valid[None, :], 0.0, -10000.0).astype(jnp.float32)

    return pl.pallas_call(
        partial(_encoder_kernel, batch=B, seq=S),
        out_shape=jax.ShapeDtypeStruct((B, HIDDEN), jnp.float32),
    )(emb, mask2d, params["emb_ln_g"], params["emb_ln_b"], *params["packed"])


bert_encode = jax.jit(_bert_encode_impl)


def bert_dot_dual_single_forward(params_q, params_d, input_ids, attention_mask, is_query):
    # TODO(synk): on v7x the two independent backbones (bertQ / bertD) could be
    # sharded across the two TensorCores in one fused call; kept as two separate
    # calls to preserve the module's is_query forward API.
    params = params_q if is_query else params_d
    return bert_encode(params, input_ids, attention_mask)   # CLS embedding (B, H)


# ---------------------------------------------------------------------------
# Deterministic parameter init (normal std=0.02, LN gamma=1 / beta=0, bias=0),
# packed into per-layer-stacked arrays consumed directly by the fused kernel.
# ---------------------------------------------------------------------------
def init_bert_params(key):
    keys = iter(jax.random.split(key, 256))

    def normal(shape):
        return jax.random.normal(next(keys), shape, dtype=jnp.float32) * 0.02

    word_emb = normal((VOCAB, HIDDEN))
    pos_emb = normal((MAX_POS, HIDDEN))
    type_emb = normal((TYPE_VOCAB, HIDDEN))

    scale = 1.0 / math.sqrt(HEAD_DIM)
    wqkv, bqkv, wao, bao, ln1g, ln1b = [], [], [], [], [], []
    wi, bi, wff, bff, ln2g, ln2b = [], [], [], [], [], []
    for _ in range(N_LAYERS):
        q_w = normal((HIDDEN, HIDDEN))
        k_w = normal((HIDDEN, HIDDEN))
        v_w = normal((HIDDEN, HIDDEN))
        ao_w = normal((HIDDEN, HIDDEN))
        i_w = normal((HIDDEN, INTERMEDIATE))
        o_w = normal((INTERMEDIATE, HIDDEN))

        # fold 1/sqrt(head_dim) attention scale into the Q projection
        wqkv.append(jnp.concatenate([q_w * scale, k_w, v_w], axis=1))   # (H, 3H)
        bqkv.append(jnp.zeros((1, 3 * HIDDEN), jnp.float32))
        wao.append(ao_w)
        bao.append(jnp.zeros((1, HIDDEN), jnp.float32))
        ln1g.append(jnp.ones((1, HIDDEN), jnp.float32))
        ln1b.append(jnp.zeros((1, HIDDEN), jnp.float32))
        wi.append(i_w)
        bi.append(jnp.zeros((1, INTERMEDIATE), jnp.float32))
        wff.append(o_w)
        bff.append(jnp.zeros((1, HIDDEN), jnp.float32))
        ln2g.append(jnp.ones((1, HIDDEN), jnp.float32))
        ln2b.append(jnp.zeros((1, HIDDEN), jnp.float32))

    packed = tuple(jnp.stack(t) for t in
                   (wqkv, bqkv, wao, bao, ln1g, ln1b, wi, bi, wff, bff, ln2g, ln2b))
    return {
        "word_emb": word_emb,
        "pos_emb": pos_emb,
        "type_emb": type_emb,
        "emb_ln_g": jnp.ones((1, HIDDEN), jnp.float32),
        "emb_ln_b": jnp.zeros((1, HIDDEN), jnp.float32),
        "packed": packed,
    }


if __name__ == "__main__":
    key = jax.random.PRNGKey(0)
    kq, kd, kids = jax.random.split(key, 3)

    # TODO(synk): from_pretrained checkpoint loading / adapter add-train-save
    # machinery has no kernel equivalent; both backbones use synthetic weights.
    params_q = init_bert_params(kq)   # bertQ
    params_d = init_bert_params(kd)   # bertD

    B, S = 2, 8
    input_ids = jax.random.randint(kids, (B, S), 0, VOCAB, dtype=jnp.int32)
    attention_mask = jnp.array([[1, 1, 1, 1, 1, 1, 1, 1],
                                [1, 1, 1, 1, 1, 1, 0, 0]], dtype=jnp.int32)

    q_emb = bert_dot_dual_single_forward(params_q, params_d, input_ids, attention_mask, True)
    d_emb = bert_dot_dual_single_forward(params_q, params_d, input_ids, attention_mask, False)
    jax.block_until_ready((q_emb, d_emb))

    assert q_emb.shape == (B, HIDDEN) and d_emb.shape == (B, HIDDEN)
    assert q_emb.dtype == jnp.float32 and d_emb.dtype == jnp.float32
    print("KERNEL_OK")
</pallas_src>

<mosaic_0001>
module attributes {stable_mosaic.version = 11 : i64} {
  func.func @_encoder_kernel(%arg0: memref<16x32xf32, #tpu.memory_space<vmem>>, %arg1: memref<16x16xf32, #tpu.memory_space<vmem>>, %arg2: memref<1x32xf32, #tpu.memory_space<vmem>>, %arg3: memref<1x32xf32, #tpu.memory_space<vmem>>, %arg4: memref<2x32x96xf32, #tpu.memory_space<vmem>>, %arg5: memref<2x1x96xf32, #tpu.memory_space<vmem>>, %arg6: memref<2x32x32xf32, #tpu.memory_space<vmem>>, %arg7: memref<2x1x32xf32, #tpu.memory_space<vmem>>, %arg8: memref<2x1x32xf32, #tpu.memory_space<vmem>>, %arg9: memref<2x1x32xf32, #tpu.memory_space<vmem>>, %arg10: memref<2x32x64xf32, #tpu.memory_space<vmem>>, %arg11: memref<2x1x64xf32, #tpu.memory_space<vmem>>, %arg12: memref<2x64x32xf32, #tpu.memory_space<vmem>>, %arg13: memref<2x1x32xf32, #tpu.memory_space<vmem>>, %arg14: memref<2x1x32xf32, #tpu.memory_space<vmem>>, %arg15: memref<2x1x32xf32, #tpu.memory_space<vmem>>, %arg16: memref<2x32xf32, #tpu.memory_space<vmem>>) attributes {dimension_semantics = [], scalar_prefetch = 0 : i64, scratch_operands = 0 : i64, tpu.core_type = #tpu.core_type<tc>} {
    %c0 = arith.constant 0 : index
    %c0_0 = arith.constant 0 : index
    %0 = vector.load %arg1[%c0, %c0_0] : memref<16x16xf32, #tpu.memory_space<vmem>>, vector<16x16xf32>
    %c0_1 = arith.constant 0 : index
    %c0_2 = arith.constant 0 : index
    %1 = vector.load %arg0[%c0_1, %c0_2] : memref<16x32xf32, #tpu.memory_space<vmem>>, vector<16x32xf32>
    %c0_3 = arith.constant 0 : index
    %c0_4 = arith.constant 0 : index
    %2 = vector.load %arg2[%c0_3, %c0_4] : memref<1x32xf32, #tpu.memory_space<vmem>>, vector<1x32xf32>
    %c0_5 = arith.constant 0 : index
    %c0_6 = arith.constant 0 : index
    %3 = vector.load %arg3[%c0_5, %c0_6] : memref<1x32xf32, #tpu.memory_space<vmem>>, vector<1x32xf32>
    %cst = arith.constant dense<0.000000e+00> : vector<16xf32>
    %4 = vector.multi_reduction <add>, %1, %cst [1] : vector<16x32xf32> to vector<16xf32>
    %5 = vector.shape_cast %4 : vector<16xf32> to vector<16x1xf32>
    %cst_7 = arith.constant 3.200000e+01 : f32
    %6 = vector.broadcast %cst_7 : f32 to vector<16x1xf32>
    %7 = arith.divf %5, %6 : vector<16x1xf32>
    %8 = vector.broadcast %7 : vector<16x1xf32> to vector<16x32xf32>
    %9 = arith.subf %1, %8 : vector<16x32xf32>
    %10 = arith.mulf %9, %9 : vector<16x32xf32>
    %cst_8 = arith.constant dense<0.000000e+00> : vector<16xf32>
    %11 = vector.multi_reduction <add>, %10, %cst_8 [1] : vector<16x32xf32> to vector<16xf32>
    %12 = vector.shape_cast %11 : vector<16xf32> to vector<16x1xf32>
    %cst_9 = arith.constant 3.200000e+01 : f32
    %13 = vector.broadcast %cst_9 : f32 to vector<16x1xf32>
    %14 = arith.divf %12, %13 : vector<16x1xf32>
    %15 = vector.broadcast %7 : vector<16x1xf32> to vector<16x32xf32>
    %16 = arith.subf %1, %15 : vector<16x32xf32>
    %cst_10 = arith.constant 9.99999996E-13 : f32
    %17 = vector.broadcast %cst_10 : f32 to vector<16x1xf32>
    %18 = arith.addf %14, %17 : vector<16x1xf32>
    %19 = math.rsqrt %18 : vector<16x1xf32>
    %20 = vector.broadcast %19 : vector<16x1xf32> to vector<16x32xf32>
    %21 = arith.mulf %16, %20 : vector<16x32xf32>
    %22 = vector.broadcast %2 : vector<1x32xf32> to vector<16x32xf32>
    %23 = arith.mulf %21, %22 : vector<16x32xf32>
    %24 = vector.broadcast %3 : vector<1x32xf32> to vector<16x32xf32>
    %25 = arith.addf %23, %24 : vector<16x32xf32>
    %c0_11 = arith.constant 0 : index
    %c0_12 = arith.constant 0 : index
    %c0_13 = arith.constant 0 : index
    %26 = vector.load %arg4[%c0_11, %c0_12, %c0_13] : memref<2x32x96xf32, #tpu.memory_space<vmem>>, vector<1x32x96xf32>
    %27 = vector.shape_cast %26 : vector<1x32x96xf32> to vector<32x96xf32>
    %cst_14 = arith.constant dense<0.000000e+00> : vector<16x96xf32>
    %28 = tpu.matmul %25, %27, %cst_14 {dimension_numbers = #tpu.dot_dimension_numbers<[1], [0], [0], [1], [0, 0, 1, 1], [], []>} : vector<16x32xf32>, vector<32x96xf32>, vector<16x96xf32> -> vector<16x96xf32>
    %c0_15 = arith.constant 0 : index
    %c0_16 = arith.constant 0 : index
    %c0_17 = arith.constant 0 : index
    %29 = vector.load %arg5[%c0_15, %c0_16, %c0_17] : memref<2x1x96xf32, #tpu.memory_space<vmem>>, vector<1x1x96xf32>
    %30 = vector.shape_cast %29 : vector<1x1x96xf32> to vector<1x96xf32>
    %31 = vector.broadcast %30 : vector<1x96xf32> to vector<16x96xf32>
    %32 = arith.addf %28, %31 : vector<16x96xf32>
    %c0_18 = arith.constant 0 : index
    %c0_19 = arith.constant 0 : index
    %c0_20 = arith.constant 0 : index
    %33 = vector.load %arg6[%c0_18, %c0_19, %c0_20] : memref<2x32x32xf32, #tpu.memory_space<vmem>>, vector<1x32x32xf32>
    %34 = vector.shape_cast %33 : vector<1x32x32xf32> to vector<32x32xf32>
    %cst_21 = arith.constant 0.000000e+00 : f32
    %35 = vector.broadcast %cst_21 : f32 to vector<16x32xf32>
    %36 = vector.extract_strided_slice %32 {offsets = [0, 0], sizes = [16, 16], strides = [1, 1]} : vector<16x96xf32> to vector<16x16xf32>
    %37 = vector.extract_strided_slice %32 {offsets = [0, 32], sizes = [16, 16], strides = [1, 1]} : vector<16x96xf32> to vector<16x16xf32>
    %38 = vector.extract_strided_slice %32 {offsets = [0, 64], sizes = [16, 16], strides = [1, 1]} : vector<16x96xf32> to vector<16x16xf32>
    %cst_22 = arith.constant dense<0.000000e+00> : vector<16x16xf32>
    %39 = tpu.matmul %36, %37, %cst_22 {dimension_numbers = #tpu.dot_dimension_numbers<[1], [1], [0], [0], [0, 0, 1, 0], [], []>} : vector<16x16xf32>, vector<16x16xf32>, vector<16x16xf32> -> vector<16x16xf32>
    %40 = arith.addf %39, %0 : vector<16x16xf32>
    %cst_23 = arith.constant dense<0xFF800000> : vector<16xf32>
    %41 = vector.multi_reduction <maximumf>, %40, %cst_23 [1] : vector<16x16xf32> to vector<16xf32>
    %42 = vector.shape_cast %41 : vector<16xf32> to vector<16x1xf32>
    %43 = vector.broadcast %42 : vector<16x1xf32> to vector<16x16xf32>
    %44 = arith.subf %40, %43 : vector<16x16xf32>
    %45 = math.exp %44 : vector<16x16xf32>
    %cst_24 = arith.constant dense<0.000000e+00> : vector<16xf32>
    %46 = vector.multi_reduction <add>, %45, %cst_24 [1] : vector<16x16xf32> to vector<16xf32>
    %47 = vector.shape_cast %46 : vector<16xf32> to vector<16x1xf32>
    %48 = tpu.reciprocal %47 {approx = true} : vector<16x1xf32> -> vector<16x1xf32>
    %49 = vector.broadcast %48 : vector<16x1xf32> to vector<16x16xf32>
    %50 = arith.mulf %45, %49 : vector<16x16xf32>
    %cst_25 = arith.constant dense<0.000000e+00> : vector<16x16xf32>
    %51 = tpu.matmul %50, %38, %cst_25 {dimension_numbers = #tpu.dot_dimension_numbers<[1], [0], [0], [1], [0, 0, 1, 1], [], []>} : vector<16x16xf32>, vector<16x16xf32>, vector<16x16xf32> -> vector<16x16xf32>
    %52 = vector.extract_strided_slice %34 {offsets = [0, 0], sizes = [16, 32], strides = [1, 1]} : vector<32x32xf32> to vector<16x32xf32>
    %cst_26 = arith.constant dense<0.000000e+00> : vector<16x32xf32>
    %53 = tpu.matmul %51, %52, %cst_26 {dimension_numbers = #tpu.dot_dimension_numbers<[1], [0], [0], [1], [0, 0, 1, 1], [], []>} : vector<16x16xf32>, vector<16x32xf32>, vector<16x32xf32> -> vector<16x32xf32>
    %54 = arith.addf %35, %53 : vector<16x32xf32>
    %55 = vector.extract_strided_slice %32 {offsets = [0, 16], sizes = [16, 16], strides = [1, 1]} : vector<16x96xf32> to vector<16x16xf32>
    %56 = vector.extract_strided_slice %32 {offsets = [0, 48], sizes = [16, 16], strides = [1, 1]} : vector<16x96xf32> to vector<16x16xf32>
    %57 = vector.extract_strided_slice %32 {offsets = [0, 80], sizes = [16, 16], strides = [1, 1]} : vector<16x96xf32> to vector<16x16xf32>
    %cst_27 = arith.constant dense<0.000000e+00> : vector<16x16xf32>
    %58 = tpu.matmul %55, %56, %cst_27 {dimension_numbers = #tpu.dot_dimension_numbers<[1], [1], [0], [0], [0, 0, 1, 0], [], []>} : vector<16x16xf32>, vector<16x16xf32>, vector<16x16xf32> -> vector<16x16xf32>
    %59 = arith.addf %58, %0 : vector<16x16xf32>
    %cst_28 = arith.constant dense<0xFF800000> : vector<16xf32>
    %60 = vector.multi_reduction <maximumf>, %59, %cst_28 [1] : vector<16x16xf32> to vector<16xf32>
    %61 = vector.shape_cast %60 : vector<16xf32> to vector<16x1xf32>
    %62 = vector.broadcast %61 : vector<16x1xf32> to vector<16x16xf32>
    %63 = arith.subf %59, %62 : vector<16x16xf32>
    %64 = math.exp %63 : vector<16x16xf32>
    %cst_29 = arith.constant dense<0.000000e+00> : vector<16xf32>
    %65 = vector.multi_reduction <add>, %64, %cst_29 [1] : vector<16x16xf32> to vector<16xf32>
    %66 = vector.shape_cast %65 : vector<16xf32> to vector<16x1xf32>
    %67 = tpu.reciprocal %66 {approx = true} : vector<16x1xf32> -> vector<16x1xf32>
    %68 = vector.broadcast %67 : vector<16x1xf32> to vector<16x16xf32>
    %69 = arith.mulf %64, %68 : vector<16x16xf32>
    %cst_30 = arith.constant dense<0.000000e+00> : vector<16x16xf32>
    %70 = tpu.matmul %69, %57, %cst_30 {dimension_numbers = #tpu.dot_dimension_numbers<[1], [0], [0], [1], [0, 0, 1, 1], [], []>} : vector<16x16xf32>, vector<16x16xf32>, vector<16x16xf32> -> vector<16x16xf32>
    %71 = vector.extract_strided_slice %34 {offsets = [16, 0], sizes = [16, 32], strides = [1, 1]} : vector<32x32xf32> to vector<16x32xf32>
    %cst_31 = arith.constant dense<0.000000e+00> : vector<16x32xf32>
    %72 = tpu.matmul %70, %71, %cst_31 {dimension_numbers = #tpu.dot_dimension_numbers<[1], [0], [0], [1], [0, 0, 1, 1], [], []>} : vector<16x16xf32>, vector<16x32xf32>, vector<16x32xf32> -> vector<16x32xf32>
    %73 = arith.addf %54, %72 : vector<16x32xf32>
    %c0_32 = arith.constant 0 : index
    %c0_33 = arith.constant 0 : index
    %c0_34 = arith.constant 0 : index
    %74 = vector.load %arg7[%c0_32, %c0_33, %c0_34] : memref<2x1x32xf32, #tpu.memory_space<vmem>>, vector<1x1x32xf32>
    %75 = vector.shape_cast %74 : vector<1x1x32xf32> to vector<1x32xf32>
    %76 = vector.broadcast %75 : vector<1x32xf32> to vector<16x32xf32>
    %77 = arith.addf %73, %76 : vector<16x32xf32>
    %78 = arith.addf %77, %25 : vector<16x32xf32>
    %c0_35 = arith.constant 0 : index
    %c0_36 = arith.constant 0 : index
    %c0_37 = arith.constant 0 : index
    %79 = vector.load %arg8[%c0_35, %c0_36, %c0_37] : memref<2x1x32xf32, #tpu.memory_space<vmem>>, vector<1x1x32xf32>
    %80 = vector.shape_cast %79 : vector<1x1x32xf32> to vector<1x32xf32>
    %c0_38 = arith.constant 0 : index
    %c0_39 = arith.constant 0 : index
    %c0_40 = arith.constant 0 : index
    %81 = vector.load %arg9[%c0_38, %c0_39, %c0_40] : memref<2x1x32xf32, #tpu.memory_space<vmem>>, vector<1x1x32xf32>
    %82 = vector.shape_cast %81 : vector<1x1x32xf32> to vector<1x32xf32>
    %cst_41 = arith.constant dense<0.000000e+00> : vector<16xf32>
    %83 = vector.multi_reduction <add>, %78, %cst_41 [1] : vector<16x32xf32> to vector<16xf32>
    %84 = vector.shape_cast %83 : vector<16xf32> to vector<16x1xf32>
    %cst_42 = arith.constant 3.200000e+01 : f32
    %85 = vector.broadcast %cst_42 : f32 to vector<16x1xf32>
    %86 = arith.divf %84, %85 : vector<16x1xf32>
    %87 = vector.broadcast %86 : vector<16x1xf32> to vector<16x32xf32>
    %88 = arith.subf %78, %87 : vector<16x32xf32>
    %89 = arith.mulf %88, %88 : vector<16x32xf32>
    %cst_43 = arith.constant dense<0.000000e+00> : vector<16xf32>
    %90 = vector.multi_reduction <add>, %89, %cst_43 [1] : vector<16x32xf32> to vector<16xf32>
    %91 = vector.shape_cast %90 : vector<16xf32> to vector<16x1xf32>
    %cst_44 = arith.constant 3.200000e+01 : f32
    %92 = vector.broadcast %cst_44 : f32 to vector<16x1xf32>
    %93 = arith.divf %91, %92 : vector<16x1xf32>
    %94 = vector.broadcast %86 : vector<16x1xf32> to vector<16x32xf32>
    %95 = arith.subf %78, %94 : vector<16x32xf32>
    %cst_45 = arith.constant 9.99999996E-13 : f32
    %96 = vector.broadcast %cst_45 : f32 to vector<16x1xf32>
    %97 = arith.addf %93, %96 : vector<16x1xf32>
    %98 = math.rsqrt %97 : vector<16x1xf32>
    %99 = vector.broadcast %98 : vector<16x1xf32> to vector<16x32xf32>
    %100 = arith.mulf %95, %99 : vector<16x32xf32>
    %101 = vector.broadcast %80 : vector<1x32xf32> to vector<16x32xf32>
    %102 = arith.mulf %100, %101 : vector<16x32xf32>
    %103 = vector.broadcast %82 : vector<1x32xf32> to vector<16x32xf32>
    %104 = arith.addf %102, %103 : vector<16x32xf32>
    %c0_46 = arith.constant 0 : index
    %c0_47 = arith.constant 0 : index
    %c0_48 = arith.constant 0 : index
    %105 = vector.load %arg10[%c0_46, %c0_47, %c0_48] : memref<2x32x64xf32, #tpu.memory_space<vmem>>, vector<1x32x64xf32>
    %106 = vector.shape_cast %105 : vector<1x32x64xf32> to vector<32x64xf32>
    %cst_49 = arith.constant dense<0.000000e+00> : vector<16x64xf32>
    %107 = tpu.matmul %104, %106, %cst_49 {dimension_numbers = #tpu.dot_dimension_numbers<[1], [0], [0], [1], [0, 0, 1, 1], [], []>} : vector<16x32xf32>, vector<32x64xf32>, vector<16x64xf32> -> vector<16x64xf32>
    %c0_50 = arith.constant 0 : index
    %c0_51 = arith.constant 0 : index
    %c0_52 = arith.constant 0 : index
    %108 = vector.load %arg11[%c0_50, %c0_51, %c0_52] : memref<2x1x64xf32, #tpu.memory_space<vmem>>, vector<1x1x64xf32>
    %109 = vector.shape_cast %108 : vector<1x1x64xf32> to vector<1x64xf32>
    %110 = vector.broadcast %109 : vector<1x64xf32> to vector<16x64xf32>
    %111 = arith.addf %107, %110 : vector<16x64xf32>
    %112 = arith.mulf %111, %111 : vector<16x64xf32>
    %113 = arith.mulf %111, %112 : vector<16x64xf32>
    %cst_53 = arith.constant 4.471500e-02 : f32
    %114 = vector.broadcast %cst_53 : f32 to vector<16x64xf32>
    %115 = arith.mulf %114, %113 : vector<16x64xf32>
    %116 = arith.addf %111, %115 : vector<16x64xf32>
    %cst_54 = arith.constant 0.797884583 : f32
    %117 = vector.broadcast %cst_54 : f32 to vector<16x64xf32>
    %118 = arith.mulf %117, %116 : vector<16x64xf32>
    %119 = math.tanh %118 : vector<16x64xf32>
    %cst_55 = arith.constant 1.000000e+00 : f32
    %120 = vector.broadcast %cst_55 : f32 to vector<16x64xf32>
    %121 = arith.addf %120, %119 : vector<16x64xf32>
    %cst_56 = arith.constant 5.000000e-01 : f32
    %122 = vector.broadcast %cst_56 : f32 to vector<16x64xf32>
    %123 = arith.mulf %122, %121 : vector<16x64xf32>
    %124 = arith.mulf %111, %123 : vector<16x64xf32>
    %c0_57 = arith.constant 0 : index
    %c0_58 = arith.constant 0 : index
    %c0_59 = arith.constant 0 : index
    %125 = vector.load %arg12[%c0_57, %c0_58, %c0_59] : memref<2x64x32xf32, #tpu.memory_space<vmem>>, vector<1x64x32xf32>
    %126 = vector.shape_cast %125 : vector<1x64x32xf32> to vector<64x32xf32>
    %cst_60 = arith.constant dense<0.000000e+00> : vector<16x32xf32>
    %127 = tpu.matmul %124, %126, %cst_60 {dimension_numbers = #tpu.dot_dimension_numbers<[1], [0], [0], [1], [0, 0, 1, 1], [], []>} : vector<16x64xf32>, vector<64x32xf32>, vector<16x32xf32> -> vector<16x32xf32>
    %c0_61 = arith.constant 0 : index
    %c0_62 = arith.constant 0 : index
    %c0_63 = arith.constant 0 : index
    %128 = vector.load %arg13[%c0_61, %c0_62, %c0_63] : memref<2x1x32xf32, #tpu.memory_space<vmem>>, vector<1x1x32xf32>
    %129 = vector.shape_cast %128 : vector<1x1x32xf32> to vector<1x32xf32>
    %130 = vector.broadcast %129 : vector<1x32xf32> to vector<16x32xf32>
    %131 = arith.addf %127, %130 : vector<16x32xf32>
    %132 = arith.addf %131, %104 : vector<16x32xf32>
    %c0_64 = arith.constant 0 : index
    %c0_65 = arith.constant 0 : index
    %c0_66 = arith.constant 0 : index
    %133 = vector.load %arg14[%c0_64, %c0_65, %c0_66] : memref<2x1x32xf32, #tpu.memory_space<vmem>>, vector<1x1x32xf32>
    %134 = vector.shape_cast %133 : vector<1x1x32xf32> to vector<1x32xf32>
    %c0_67 = arith.constant 0 : index
    %c0_68 = arith.constant 0 : index
    %c0_69 = arith.constant 0 : index
    %135 = vector.load %arg15[%c0_67, %c0_68, %c0_69] : memref<2x1x32xf32, #tpu.memory_space<vmem>>, vector<1x1x32xf32>
    %136 = vector.shape_cast %135 : vector<1x1x32xf32> to vector<1x32xf32>
    %cst_70 = arith.constant dense<0.000000e+00> : vector<16xf32>
    %137 = vector.multi_reduction <add>, %132, %cst_70 [1] : vector<16x32xf32> to vector<16xf32>
    %138 = vector.shape_cast %137 : vector<16xf32> to vector<16x1xf32>
    %cst_71 = arith.constant 3.200000e+01 : f32
    %139 = vector.broadcast %cst_71 : f32 to vector<16x1xf32>
    %140 = arith.divf %138, %139 : vector<16x1xf32>
    %141 = vector.broadcast %140 : vector<16x1xf32> to vector<16x32xf32>
    %142 = arith.subf %132, %141 : vector<16x32xf32>
    %143 = arith.mulf %142, %142 : vector<16x32xf32>
    %cst_72 = arith.constant dense<0.000000e+00> : vector<16xf32>
    %144 = vector.multi_reduction <add>, %143, %cst_72 [1] : vector<16x32xf32> to vector<16xf32>
    %145 = vector.shape_cast %144 : vector<16xf32> to vector<16x1xf32>
    %cst_73 = arith.constant 3.200000e+01 : f32
    %146 = vector.broadcast %cst_73 : f32 to vector<16x1xf32>
    %147 = arith.divf %145, %146 : vector<16x1xf32>
    %148 = vector.broadcast %140 : vector<16x1xf32> to vector<16x32xf32>
    %149 = arith.subf %132, %148 : vector<16x32xf32>
    %cst_74 = arith.constant 9.99999996E-13 : f32
    %150 = vector.broadcast %cst_74 : f32 to vector<16x1xf32>
    %151 = arith.addf %147, %150 : vector<16x1xf32>
    %152 = math.rsqrt %151 : vector<16x1xf32>
    %153 = vector.broadcast %152 : vector<16x1xf32> to vector<16x32xf32>
    %154 = arith.mulf %149, %153 : vector<16x32xf32>
    %155 = vector.broadcast %134 : vector<1x32xf32> to vector<16x32xf32>
    %156 = arith.mulf %154, %155 : vector<16x32xf32>
    %157 = vector.broadcast %136 : vector<1x32xf32> to vector<16x32xf32>
    %158 = arith.addf %156, %157 : vector<16x32xf32>
    %c1 = arith.constant 1 : index
    %c0_75 = arith.constant 0 : index
    %c0_76 = arith.constant 0 : index
    %159 = vector.load %arg4[%c1, %c0_75, %c0_76] : memref<2x32x96xf32, #tpu.memory_space<vmem>>, vector<1x32x96xf32>
    %160 = vector.shape_cast %159 : vector<1x32x96xf32> to vector<32x96xf32>
    %cst_77 = arith.constant dense<0.000000e+00> : vector<16x96xf32>
    %161 = tpu.matmul %158, %160, %cst_77 {dimension_numbers = #tpu.dot_dimension_numbers<[1], [0], [0], [1], [0, 0, 1, 1], [], []>} : vector<16x32xf32>, vector<32x96xf32>, vector<16x96xf32> -> vector<16x96xf32>
    %c1_78 = arith.constant 1 : index
    %c0_79 = arith.constant 0 : index
    %c0_80 = arith.constant 0 : index
    %162 = vector.load %arg5[%c1_78, %c0_79, %c0_80] : memref<2x1x96xf32, #tpu.memory_space<vmem>>, vector<1x1x96xf32>
    %163 = vector.shape_cast %162 : vector<1x1x96xf32> to vector<1x96xf32>
    %164 = vector.broadcast %163 : vector<1x96xf32> to vector<16x96xf32>
    %165 = arith.addf %161, %164 : vector<16x96xf32>
    %c1_81 = arith.constant 1 : index
    %c0_82 = arith.constant 0 : index
    %c0_83 = arith.constant 0 : index
    %166 = vector.load %arg6[%c1_81, %c0_82, %c0_83] : memref<2x32x32xf32, #tpu.memory_space<vmem>>, vector<1x32x32xf32>
    %167 = vector.shape_cast %166 : vector<1x32x32xf32> to vector<32x32xf32>
    %cst_84 = arith.constant 0.000000e+00 : f32
    %168 = vector.broadcast %cst_84 : f32 to vector<16x32xf32>
    %169 = vector.extract_strided_slice %165 {offsets = [0, 0], sizes = [16, 16], strides = [1, 1]} : vector<16x96xf32> to vector<16x16xf32>
    %170 = vector.extract_strided_slice %165 {offsets = [0, 32], sizes = [16, 16], strides = [1, 1]} : vector<16x96xf32> to vector<16x16xf32>
    %171 = vector.extract_strided_slice %165 {offsets = [0, 64], sizes = [16, 16], strides = [1, 1]} : vector<16x96xf32> to vector<16x16xf32>
    %cst_85 = arith.constant dense<0.000000e+00> : vector<16x16xf32>
    %172 = tpu.matmul %169, %170, %cst_85 {dimension_numbers = #tpu.dot_dimension_numbers<[1], [1], [0], [0], [0, 0, 1, 0], [], []>} : vector<16x16xf32>, vector<16x16xf32>, vector<16x16xf32> -> vector<16x16xf32>
    %173 = arith.addf %172, %0 : vector<16x16xf32>
    %cst_86 = arith.constant dense<0xFF800000> : vector<16xf32>
    %174 = vector.multi_reduction <maximumf>, %173, %cst_86 [1] : vector<16x16xf32> to vector<16xf32>
    %175 = vector.shape_cast %174 : vector<16xf32> to vector<16x1xf32>
    %176 = vector.broadcast %175 : vector<16x1xf32> to vector<16x16xf32>
    %177 = arith.subf %173, %176 : vector<16x16xf32>
    %178 = math.exp %177 : vector<16x16xf32>
    %cst_87 = arith.constant dense<0.000000e+00> : vector<16xf32>
    %179 = vector.multi_reduction <add>, %178, %cst_87 [1] : vector<16x16xf32> to vector<16xf32>
    %180 = vector.shape_cast %179 : vector<16xf32> to vector<16x1xf32>
    %181 = tpu.reciprocal %180 {approx = true} : vector<16x1xf32> -> vector<16x1xf32>
    %182 = vector.broadcast %181 : vector<16x1xf32> to vector<16x16xf32>
    %183 = arith.mulf %178, %182 : vector<16x16xf32>
    %cst_88 = arith.constant dense<0.000000e+00> : vector<16x16xf32>
    %184 = tpu.matmul %183, %171, %cst_88 {dimension_numbers = #tpu.dot_dimension_numbers<[1], [0], [0], [1], [0, 0, 1, 1], [], []>} : vector<16x16xf32>, vector<16x16xf32>, vector<16x16xf32> -> vector<16x16xf32>
    %185 = vector.extract_strided_slice %167 {offsets = [0, 0], sizes = [16, 32], strides = [1, 1]} : vector<32x32xf32> to vector<16x32xf32>
    %cst_89 = arith.constant dense<0.000000e+00> : vector<16x32xf32>
    %186 = tpu.matmul %184, %185, %cst_89 {dimension_numbers = #tpu.dot_dimension_numbers<[1], [0], [0], [1], [0, 0, 1, 1], [], []>} : vector<16x16xf32>, vector<16x32xf32>, vector<16x32xf32> -> vector<16x32xf32>
    %187 = arith.addf %168, %186 : vector<16x32xf32>
    %188 = vector.extract_strided_slice %165 {offsets = [0, 16], sizes = [16, 16], strides = [1, 1]} : vector<16x96xf32> to vector<16x16xf32>
    %189 = vector.extract_strided_slice %165 {offsets = [0, 48], sizes = [16, 16], strides = [1, 1]} : vector<16x96xf32> to vector<16x16xf32>
    %190 = vector.extract_strided_slice %165 {offsets = [0, 80], sizes = [16, 16], strides = [1, 1]} : vector<16x96xf32> to vector<16x16xf32>
    %cst_90 = arith.constant dense<0.000000e+00> : vector<16x16xf32>
    %191 = tpu.matmul %188, %189, %cst_90 {dimension_numbers = #tpu.dot_dimension_numbers<[1], [1], [0], [0], [0, 0, 1, 0], [], []>} : vector<16x16xf32>, vector<16x16xf32>, vector<16x16xf32> -> vector<16x16xf32>
    %192 = arith.addf %191, %0 : vector<16x16xf32>
    %cst_91 = arith.constant dense<0xFF800000> : vector<16xf32>
    %193 = vector.multi_reduction <maximumf>, %192, %cst_91 [1] : vector<16x16xf32> to vector<16xf32>
    %194 = vector.shape_cast %193 : vector<16xf32> to vector<16x1xf32>
    %195 = vector.broadcast %194 : vector<16x1xf32> to vector<16x16xf32>
    %196 = arith.subf %192, %195 : vector<16x16xf32>
    %197 = math.exp %196 : vector<16x16xf32>
    %cst_92 = arith.constant dense<0.000000e+00> : vector<16xf32>
    %198 = vector.multi_reduction <add>, %197, %cst_92 [1] : vector<16x16xf32> to vector<16xf32>
    %199 = vector.shape_cast %198 : vector<16xf32> to vector<16x1xf32>
    %200 = tpu.reciprocal %199 {approx = true} : vector<16x1xf32> -> vector<16x1xf32>
    %201 = vector.broadcast %200 : vector<16x1xf32> to vector<16x16xf32>
    %202 = arith.mulf %197, %201 : vector<16x16xf32>
    %cst_93 = arith.constant dense<0.000000e+00> : vector<16x16xf32>
    %203 = tpu.matmul %202, %190, %cst_93 {dimension_numbers = #tpu.dot_dimension_numbers<[1], [0], [0], [1], [0, 0, 1, 1], [], []>} : vector<16x16xf32>, vector<16x16xf32>, vector<16x16xf32> -> vector<16x16xf32>
    %204 = vector.extract_strided_slice %167 {offsets = [16, 0], sizes = [16, 32], strides = [1, 1]} : vector<32x32xf32> to vector<16x32xf32>
    %cst_94 = arith.constant dense<0.000000e+00> : vector<16x32xf32>
    %205 = tpu.matmul %203, %204, %cst_94 {dimension_numbers = #tpu.dot_dimension_numbers<[1], [0], [0], [1], [0, 0, 1, 1], [], []>} : vector<16x16xf32>, vector<16x32xf32>, vector<16x32xf32> -> vector<16x32xf32>
    %206 = arith.addf %187, %205 : vector<16x32xf32>
    %c1_95 = arith.constant 1 : index
    %c0_96 = arith.constant 0 : index
    %c0_97 = arith.constant 0 : index
    %207 = vector.load %arg7[%c1_95, %c0_96, %c0_97] : memref<2x1x32xf32, #tpu.memory_space<vmem>>, vector<1x1x32xf32>
    %208 = vector.shape_cast %207 : vector<1x1x32xf32> to vector<1x32xf32>
    %209 = vector.broadcast %208 : vector<1x32xf32> to vector<16x32xf32>
    %210 = arith.addf %206, %209 : vector<16x32xf32>
    %211 = arith.addf %210, %158 : vector<16x32xf32>
    %c1_98 = arith.constant 1 : index
    %c0_99 = arith.constant 0 : index
    %c0_100 = arith.constant 0 : index
    %212 = vector.load %arg8[%c1_98, %c0_99, %c0_100] : memref<2x1x32xf32, #tpu.memory_space<vmem>>, vector<1x1x32xf32>
    %213 = vector.shape_cast %212 : vector<1x1x32xf32> to vector<1x32xf32>
    %c1_101 = arith.constant 1 : index
    %c0_102 = arith.constant 0 : index
    %c0_103 = arith.constant 0 : index
    %214 = vector.load %arg9[%c1_101, %c0_102, %c0_103] : memref<2x1x32xf32, #tpu.memory_space<vmem>>, vector<1x1x32xf32>
    %215 = vector.shape_cast %214 : vector<1x1x32xf32> to vector<1x32xf32>
    %cst_104 = arith.constant dense<0.000000e+00> : vector<16xf32>
    %216 = vector.multi_reduction <add>, %211, %cst_104 [1] : vector<16x32xf32> to vector<16xf32>
    %217 = vector.shape_cast %216 : vector<16xf32> to vector<16x1xf32>
    %cst_105 = arith.constant 3.200000e+01 : f32
    %218 = vector.broadcast %cst_105 : f32 to vector<16x1xf32>
    %219 = arith.divf %217, %218 : vector<16x1xf32>
    %220 = vector.broadcast %219 : vector<16x1xf32> to vector<16x32xf32>
    %221 = arith.subf %211, %220 : vector<16x32xf32>
    %222 = arith.mulf %221, %221 : vector<16x32xf32>
    %cst_106 = arith.constant dense<0.000000e+00> : vector<16xf32>
    %223 = vector.multi_reduction <add>, %222, %cst_106 [1] : vector<16x32xf32> to vector<16xf32>
    %224 = vector.shape_cast %223 : vector<16xf32> to vector<16x1xf32>
    %cst_107 = arith.constant 3.200000e+01 : f32
    %225 = vector.broadcast %cst_107 : f32 to vector<16x1xf32>
    %226 = arith.divf %224, %225 : vector<16x1xf32>
    %227 = vector.broadcast %219 : vector<16x1xf32> to vector<16x32xf32>
    %228 = arith.subf %211, %227 : vector<16x32xf32>
    %cst_108 = arith.constant 9.99999996E-13 : f32
    %229 = vector.broadcast %cst_108 : f32 to vector<16x1xf32>
    %230 = arith.addf %226, %229 : vector<16x1xf32>
    %231 = math.rsqrt %230 : vector<16x1xf32>
    %232 = vector.broadcast %231 : vector<16x1xf32> to vector<16x32xf32>
    %233 = arith.mulf %228, %232 : vector<16x32xf32>
    %234 = vector.broadcast %213 : vector<1x32xf32> to vector<16x32xf32>
    %235 = arith.mulf %233, %234 : vector<16x32xf32>
    %236 = vector.broadcast %215 : vector<1x32xf32> to vector<16x32xf32>
    %237 = arith.addf %235, %236 : vector<16x32xf32>
    %c1_109 = arith.constant 1 : index
    %c0_110 = arith.constant 0 : index
    %c0_111 = arith.constant 0 : index
    %238 = vector.load %arg10[%c1_109, %c0_110, %c0_111] : memref<2x32x64xf32, #tpu.memory_space<vmem>>, vector<1x32x64xf32>
    %239 = vector.shape_cast %238 : vector<1x32x64xf32> to vector<32x64xf32>
    %cst_112 = arith.constant dense<0.000000e+00> : vector<16x64xf32>
    %240 = tpu.matmul %237, %239, %cst_112 {dimension_numbers = #tpu.dot_dimension_numbers<[1], [0], [0], [1], [0, 0, 1, 1], [], []>} : vector<16x32xf32>, vector<32x64xf32>, vector<16x64xf32> -> vector<16x64xf32>
    %c1_113 = arith.constant 1 : index
    %c0_114 = arith.constant 0 : index
    %c0_115 = arith.constant 0 : index
    %241 = vector.load %arg11[%c1_113, %c0_114, %c0_115] : memref<2x1x64xf32, #tpu.memory_space<vmem>>, vector<1x1x64xf32>
    %242 = vector.shape_cast %241 : vector<1x1x64xf32> to vector<1x64xf32>
    %243 = vector.broadcast %242 : vector<1x64xf32> to vector<16x64xf32>
    %244 = arith.addf %240, %243 : vector<16x64xf32>
    %245 = arith.mulf %244, %244 : vector<16x64xf32>
    %246 = arith.mulf %244, %245 : vector<16x64xf32>
    %cst_116 = arith.constant 4.471500e-02 : f32
    %247 = vector.broadcast %cst_116 : f32 to vector<16x64xf32>
    %248 = arith.mulf %247, %246 : vector<16x64xf32>
    %249 = arith.addf %244, %248 : vector<16x64xf32>
    %cst_117 = arith.constant 0.797884583 : f32
    %250 = vector.broadcast %cst_117 : f32 to vector<16x64xf32>
    %251 = arith.mulf %250, %249 : vector<16x64xf32>
    %252 = math.tanh %251 : vector<16x64xf32>
    %cst_118 = arith.constant 1.000000e+00 : f32
    %253 = vector.broadcast %cst_118 : f32 to vector<16x64xf32>
    %254 = arith.addf %253, %252 : vector<16x64xf32>
    %cst_119 = arith.constant 5.000000e-01 : f32
    %255 = vector.broadcast %cst_119 : f32 to vector<16x64xf32>
    %256 = arith.mulf %255, %254 : vector<16x64xf32>
    %257 = arith.mulf %244, %256 : vector<16x64xf32>
    %c1_120 = arith.constant 1 : index
    %c0_121 = arith.constant 0 : index
    %c0_122 = arith.constant 0 : index
    %258 = vector.load %arg12[%c1_120, %c0_121, %c0_122] : memref<2x64x32xf32, #tpu.memory_space<vmem>>, vector<1x64x32xf32>
    %259 = vector.shape_cast %258 : vector<1x64x32xf32> to vector<64x32xf32>
    %cst_123 = arith.constant dense<0.000000e+00> : vector<16x32xf32>
    %260 = tpu.matmul %257, %259, %cst_123 {dimension_numbers = #tpu.dot_dimension_numbers<[1], [0], [0], [1], [0, 0, 1, 1], [], []>} : vector<16x64xf32>, vector<64x32xf32>, vector<16x32xf32> -> vector<16x32xf32>
    %c1_124 = arith.constant 1 : index
    %c0_125 = arith.constant 0 : index
    %c0_126 = arith.constant 0 : index
    %261 = vector.load %arg13[%c1_124, %c0_125, %c0_126] : memref<2x1x32xf32, #tpu.memory_space<vmem>>, vector<1x1x32xf32>
    %262 = vector.shape_cast %261 : vector<1x1x32xf32> to vector<1x32xf32>
    %263 = vector.broadcast %262 : vector<1x32xf32> to vector<16x32xf32>
    %264 = arith.addf %260, %263 : vector<16x32xf32>
    %265 = arith.addf %264, %237 : vector<16x32xf32>
    %c1_127 = arith.constant 1 : index
    %c0_128 = arith.constant 0 : index
    %c0_129 = arith.constant 0 : index
    %266 = vector.load %arg14[%c1_127, %c0_128, %c0_129] : memref<2x1x32xf32, #tpu.memory_space<vmem>>, vector<1x1x32xf32>
    %267 = vector.shape_cast %266 : vector<1x1x32xf32> to vector<1x32xf32>
    %c1_130 = arith.constant 1 : index
    %c0_131 = arith.constant 0 : index
    %c0_132 = arith.constant 0 : index
    %268 = vector.load %arg15[%c1_130, %c0_131, %c0_132] : memref<2x1x32xf32, #tpu.memory_space<vmem>>, vector<1x1x32xf32>
    %269 = vector.shape_cast %268 : vector<1x1x32xf32> to vector<1x32xf32>
    %cst_133 = arith.constant dense<0.000000e+00> : vector<16xf32>
    %270 = vector.multi_reduction <add>, %265, %cst_133 [1] : vector<16x32xf32> to vector<16xf32>
    %271 = vector.shape_cast %270 : vector<16xf32> to vector<16x1xf32>
    %cst_134 = arith.constant 3.200000e+01 : f32
    %272 = vector.broadcast %cst_134 : f32 to vector<16x1xf32>
    %273 = arith.divf %271, %272 : vector<16x1xf32>
    %274 = vector.broadcast %273 : vector<16x1xf32> to vector<16x32xf32>
    %275 = arith.subf %265, %274 : vector<16x32xf32>
    %276 = arith.mulf %275, %275 : vector<16x32xf32>
    %cst_135 = arith.constant dense<0.000000e+00> : vector<16xf32>
    %277 = vector.multi_reduction <add>, %276, %cst_135 [1] : vector<16x32xf32> to vector<16xf32>
    %278 = vector.shape_cast %277 : vector<16xf32> to vector<16x1xf32>
    %cst_136 = arith.constant 3.200000e+01 : f32
    %279 = vector.broadcast %cst_136 : f32 to vector<16x1xf32>
    %280 = arith.divf %278, %279 : vector<16x1xf32>
    %281 = vector.broadcast %273 : vector<16x1xf32> to vector<16x32xf32>
    %282 = arith.subf %265, %281 : vector<16x32xf32>
    %cst_137 = arith.constant 9.99999996E-13 : f32
    %283 = vector.broadcast %cst_137 : f32 to vector<16x1xf32>
    %284 = arith.addf %280, %283 : vector<16x1xf32>
    %285 = math.rsqrt %284 : vector<16x1xf32>
    %286 = vector.broadcast %285 : vector<16x1xf32> to vector<16x32xf32>
    %287 = arith.mulf %282, %286 : vector<16x32xf32>
    %288 = vector.broadcast %267 : vector<1x32xf32> to vector<16x32xf32>
    %289 = arith.mulf %287, %288 : vector<16x32xf32>
    %290 = vector.broadcast %269 : vector<1x32xf32> to vector<16x32xf32>
    %291 = arith.addf %289, %290 : vector<16x32xf32>
    %292 = vector.extract_strided_slice %291 {offsets = [0, 0], sizes = [1, 32], strides = [1, 1]} : vector<16x32xf32> to vector<1x32xf32>
    %c0_138 = arith.constant 0 : index
    %c0_139 = arith.constant 0 : index
    %293 = vector.load %arg16[%c0_138, %c0_139] : memref<2x32xf32, #tpu.memory_space<vmem>>, vector<1x32xf32>
    tpu.vector_store %arg16[%c0_138, %c0_139], %292 {strides = array<i32>} : memref<2x32xf32, #tpu.memory_space<vmem>>, vector<1x32xf32>,
    %294 = vector.extract_strided_slice %291 {offsets = [8, 0], sizes = [1, 32], strides = [1, 1]} : vector<16x32xf32> to vector<1x32xf32>
    %c1_140 = arith.constant 1 : index
    %c0_141 = arith.constant 0 : index
    %295 = vector.load %arg16[%c1_140, %c0_141] : memref<2x32xf32, #tpu.memory_space<vmem>>, vector<1x32xf32>
    tpu.vector_store %arg16[%c1_140, %c0_141], %294 {strides = array<i32>} : memref<2x32xf32, #tpu.memory_space<vmem>>, vector<1x32xf32>,
    return
  }
}

</mosaic_0001>

<llo_original>
// kernel: _bert_encode_impl.1
$region0: #{_bert_encode_impl.1}
  #allocation0 [shape = 'u32[]', space=smem, size = 0x4, offset = 0x4, fixed_abs, tag = 'smem constant byte address 0x4 - core index']
  #allocation1 [shape = 'u32[144,128]{1,0:T(1,128)}', space=vmem, size = 0x12000, scoped, tag = 'internal scratch']
  %s0 = inlined_call_operand.vmem [shape: f32[16,32], index: 0, kind: input, shape index: {}]
  %s1 = inlined_call_operand.vmem [shape: f32[16,16], index: 1, kind: input, shape index: {}]
  %s2 = inlined_call_operand.vmem [shape: f32[1,32], index: 2, kind: input, shape index: {}]
  %s3 = inlined_call_operand.vmem [shape: f32[1,32], index: 3, kind: input, shape index: {}]
  %s4 = inlined_call_operand.vmem [shape: f32[2,32,96], index: 4, kind: input, shape index: {}]
  %s5 = inlined_call_operand.vmem [shape: f32[2,1,96], index: 5, kind: input, shape index: {}]
  %s6 = inlined_call_operand.vmem [shape: f32[2,32,32], index: 6, kind: input, shape index: {}]
  %s7 = inlined_call_operand.vmem [shape: f32[2,1,32], index: 7, kind: input, shape index: {}]
  %s8 = inlined_call_operand.vmem [shape: f32[2,1,32], index: 8, kind: input, shape index: {}]
  %s9 = inlined_call_operand.vmem [shape: f32[2,1,32], index: 9, kind: input, shape index: {}]
  %s10 = inlined_call_operand.vmem [shape: f32[2,32,64], index: 10, kind: input, shape index: {}]
  %s11 = inlined_call_operand.vmem [shape: f32[2,1,64], index: 11, kind: input, shape index: {}]
  %s12 = inlined_call_operand.vmem [shape: f32[2,64,32], index: 12, kind: input, shape index: {}]
  %s13 = inlined_call_operand.vmem [shape: f32[2,1,32], index: 13, kind: input, shape index: {}]
  %s14 = inlined_call_operand.vmem [shape: f32[2,1,32], index: 14, kind: input, shape index: {}]
  %s15 = inlined_call_operand.vmem [shape: f32[2,1,32], index: 15, kind: input, shape index: {}]
  %s16 = inlined_call_operand.hbm [shape: f32[2,32], index: 16, kind: output, shape index: {}]
  %s17 = sld [smem:[#allocation0]]
  $region74: #{_bert_encode_impl.1} parent=0
    _
  %s19 = ssub.s32 1, %s17
  %s20 = scalar_select 0, %s19, %s17
  $region1: #{_bert_encode_impl.1} parent=0
    #allocation2 [shape = 'u8[1024]{0}', space=vmem, size = 0x400, scoped, tag = 'output window, operand 0, single buffered']
    #allocation3 [shape = 's32[1]{0}', space=sflag, size = 0x4, scoped, tag = 'scoped memory for _bert_encode_impl.1']
    %21 = vsyncpa [#allocation3], 0
    // Predicated region
    $region2: #{_bert_encode_impl.1} parent=1 // pred_check
      _
    $region3: #{_bert_encode_impl.1} parent=1 // pred_check_branch
      %23 = sbr.rel (0) target = $region5
    $region4: #{_bert_encode_impl.1} parent=1 // pred_region
      _
    $region5: #{_bert_encode_impl.1} parent=1 // pred_fallthru
      _
    // Predicated region
    $region6: #{_bert_encode_impl.1} parent=1 // pred_check
      _
    $region7: #{_bert_encode_impl.1} parent=1 // pred_check_branch
      %25 = sbr.rel (0) target = $region9
    $region8: #{_bert_encode_impl.1} parent=1 // pred_region
      _
    $region9: #{_bert_encode_impl.1} parent=1 // pred_fallthru
      _
    // Predicated region
    $region10: #{_bert_encode_impl.1} parent=1 // pred_check
      _
    $region11: #{_bert_encode_impl.1} parent=1 // pred_check_branch
      %27 = sbr.rel (0) target = $region13
    $region12: #{_bert_encode_impl.1} parent=1 // pred_region
      _
    $region13: #{_bert_encode_impl.1} parent=1 // pred_fallthru
      _
    // Predicated region
    $region14: #{_bert_encode_impl.1} parent=1 // pred_check
      _
    $region15: #{_bert_encode_impl.1} parent=1 // pred_check_branch
      %29 = sbr.rel (0) target = $region17
    $region16: #{_bert_encode_impl.1} parent=1 // pred_region
      _
    $region17: #{_bert_encode_impl.1} parent=1 // pred_fallthru
      _
    // Predicated region
    $region18: #{_bert_encode_impl.1} parent=1 // pred_check
      _
    $region19: #{_bert_encode_impl.1} parent=1 // pred_check_branch
      %31 = sbr.rel (0) target = $region21
    $region20: #{_bert_encode_impl.1} parent=1 // pred_region
      _
    $region21: #{_bert_encode_impl.1} parent=1 // pred_fallthru
      _
    // Predicated region
    $region22: #{_bert_encode_impl.1} parent=1 // pred_check
      _
    $region23: #{_bert_encode_impl.1} parent=1 // pred_check_branch
      %33 = sbr.rel (0) target = $region25
    $region24: #{_bert_encode_impl.1} parent=1 // pred_region
      _
    $region25: #{_bert_encode_impl.1} parent=1 // pred_fallthru
      _
    // Predicated region
    $region26: #{_bert_encode_impl.1} parent=1 // pred_check
      _
    $region27: #{_bert_encode_impl.1} parent=1 // pred_check_branch
      %35 = sbr.rel (0) target = $region29
    $region28: #{_bert_encode_impl.1} parent=1 // pred_region
      _
    $region29: #{_bert_encode_impl.1} parent=1 // pred_fallthru
      _
    // Predicated region
    $region30: #{_bert_encode_impl.1} parent=1 // pred_check
      _
    $region31: #{_bert_encode_impl.1} parent=1 // pred_check_branch
      %37 = sbr.rel (0) target = $region33
    $region32: #{_bert_encode_impl.1} parent=1 // pred_region
      _
    $region33: #{_bert_encode_impl.1} parent=1 // pred_fallthru
      _
    // Predicated region
    $region34: #{_bert_encode_impl.1} parent=1 // pred_check
      _
    $region35: #{_bert_encode_impl.1} parent=1 // pred_check_branch
      %39 = sbr.rel (0) target = $region37
    $region36: #{_bert_encode_impl.1} parent=1 // pred_region
      _
    $region37: #{_bert_encode_impl.1} parent=1 // pred_fallthru
      _
    // Predicated region
    $region38: #{_bert_encode_impl.1} parent=1 // pred_check
      _
    $region39: #{_bert_encode_impl.1} parent=1 // pred_check_branch
      %41 = sbr.rel (0) target = $region41
    $region40: #{_bert_encode_impl.1} parent=1 // pred_region
      _
    $region41: #{_bert_encode_impl.1} parent=1 // pred_fallthru
      _
    // Predicated region
    $region42: #{_bert_encode_impl.1} parent=1 // pred_check
      _
    $region43: #{_bert_encode_impl.1} parent=1 // pred_check_branch
      %43 = sbr.rel (0) target = $region45
    $region44: #{_bert_encode_impl.1} parent=1 // pred_region
      _
    $region45: #{_bert_encode_impl.1} parent=1 // pred_fallthru
      _
    // Predicated region
    $region46: #{_bert_encode_impl.1} parent=1 // pred_check
      _
    $region47: #{_bert_encode_impl.1} parent=1 // pred_check_branch
      %45 = sbr.rel (0) target = $region49
    $region48: #{_bert_encode_impl.1} parent=1 // pred_region
      _
    $region49: #{_bert_encode_impl.1} parent=1 // pred_fallthru
      _
    // Predicated region
    $region50: #{_bert_encode_impl.1} parent=1 // pred_check
      _
    $region51: #{_bert_encode_impl.1} parent=1 // pred_check_branch
      %47 = sbr.rel (0) target = $region53
    $region52: #{_bert_encode_impl.1} parent=1 // pred_region
      _
    $region53: #{_bert_encode_impl.1} parent=1 // pred_fallthru
      _
    // Predicated region
    $region54: #{_bert_encode_impl.1} parent=1 // pred_check
      _
    $region55: #{_bert_encode_impl.1} parent=1 // pred_check_branch
      %49 = sbr.rel (0) target = $region57
    $region56: #{_bert_encode_impl.1} parent=1 // pred_region
      _
    $region57: #{_bert_encode_impl.1} parent=1 // pred_fallthru
      _
    // Predicated region
    $region58: #{_bert_encode_impl.1} parent=1 // pred_check
      _
    $region59: #{_bert_encode_impl.1} parent=1 // pred_check_branch
      %51 = sbr.rel (0) target = $region61
    $region60: #{_bert_encode_impl.1} parent=1 // pred_region
      _
    $region61: #{_bert_encode_impl.1} parent=1 // pred_fallthru
      _
    // Predicated region
    $region62: #{_bert_encode_impl.1} parent=1 // pred_check
      _
    $region63: #{_bert_encode_impl.1} parent=1 // pred_check_branch
      %53 = sbr.rel (0) target = $region65
    $region64: #{_bert_encode_impl.1} parent=1 // pred_region
      _
    $region65: #{_bert_encode_impl.1} parent=1 // pred_fallthru
      _
    %v54 = vld [vmem:[%s1] sm:$0xff]
    %v55 = vld [vmem:[%s1 + $0x8] sm:$0xff]
    %v56 = vld [vmem:[%s0] sm:$0xff]
    %v57 = vld [vmem:[%s0 + $0x8] sm:$0xff]
    %v58 = vld [vmem:[%s2] sm:$0x1]
    %v59 = vld [vmem:[%s3] sm:$0x1]
    %vm60 = vcmask 261120
    %v61 = vsel %vm60, %v56, 0.0
    %62 = vadd.xlane.f32.xlu0 %v61
    %v63 = vpop.xlane.xlu0 %62
    %v64 = vsel %vm60, %v57, 0.0
    %65 = vadd.xlane.f32.xlu0 %v64
    %v66 = vpop.xlane.xlu0 %65
    %v67 = vrcp.pop 32.0
    %v68 = vmul.f32 %v63, %v67
    %v69 = vmul.f32 %v66, %v67
    %v70 = vsub.f32 %v56, %v68
    %v71 = vsub.f32 %v57, %v69
    %v72 = vmul.f32 %v70, %v70
    %v73 = vmul.f32 %v71, %v71
    %v74 = vsel %vm60, %v72, 0.0
    %75 = vadd.xlane.f32.xlu0 %v74
    %v76 = vpop.xlane.xlu0 %75
    %v77 = vsel %vm60, %v73, 0.0
    %78 = vadd.xlane.f32.xlu0 %v77
    %v79 = vpop.xlane.xlu0 %78
    %v80 = vmul.f32 %v76, %v67
    %v81 = vmul.f32 %v79, %v67
    %v82 = vadd.f32 %v80, 1e-12
    %v83 = vadd.f32 %v81, 1e-12
    %v84 = vrsqrt.pop %v82
    %v85 = vrsqrt.pop %v83
    %v86 = vmul.f32 %v70, %v84
    %v87 = vmul.f32 %v71, %v85
    %v89 = vlaneseq
    %v90 = vshrl.u32 %v89, 7
    %v91 = vsub.s32 0, %v90
    %v92 = vrot.slane %v58, %v91
    %v94 = vmul.f32 %v86, %v92
    %v95 = vmul.f32 %v87, %v92
    %v97 = vlaneseq
    %v98 = vshrl.u32 %v97, 7
    %v99 = vsub.s32 0, %v98
    %v100 = vrot.slane %v59, %v99
    %v102 = vadd.f32 %v94, %v100
    %v103 = vadd.f32 %v95, %v100
    %v104 = vld [vmem:[%s4] sm:$0xff]
    %v105 = vld [vmem:[%s4 + $0x8] sm:$0xff]
    %v106 = vld [vmem:[%s4 + $0x10] sm:$0xff]
    %v107 = vld [vmem:[%s4 + $0x18] sm:$0xff]
    %v108 = vld [vmem:[%s5] sm:$0x1]
    %v110 = vlaneseq
    %v111 = vshrl.u32 %v110, 7
    %v112 = vsub.s32 0, %v111
    %v113 = vrot.slane %v108, %v112
    %v116 = vsel %vm60, %v102, 0
    %v119 = vsel %vm60, %v103, 0
    %121 = vmatprep.subr.mxu0 0.0
    %122 = vmatpush1.msra.mxu0 0.0
    %123 = vmatprep.subr.mxu0 0.0
    %124 = vmatpush1.msra.mxu0 0.0
    %125 = vmatprep.subr.mxu0 0.0
    %126 = vmatpush1.msra.mxu0 0.0
    %127 = vmatprep.subr.mxu0 0.0
    %128 = vmatpush1.msra.mxu0 0.0
    %129 = vmatprep.subr.mxu0 0.0
    %130 = vmatpush1.msra.mxu0 0.0
    %131 = vmatprep.subr.mxu0 0.0
    %132 = vmatpush1.msra.mxu0 0.0
    %133 = vmatprep.subr.mxu0 0.0
    %134 = vmatpush1.msra.mxu0 0.0
    %135 = vmatprep.subr.mxu0 0.0
    %136 = vmatpush1.msra.mxu0 0.0
    %137 = vmatprep.subr.mxu0 0.0
    %138 = vmatpush1.msra.mxu0 0.0
    %139 = vmatprep.subr.mxu0 0.0
    %140 = vmatpush1.msra.mxu0 0.0
    %141 = vmatprep.subr.mxu0 0.0
    %142 = vmatpush1.msra.mxu0 0.0
    %143 = vmatprep.subr.mxu0 0.0
    %144 = vmatpush1.msra.mxu0 0.0
    %145 = vmatprep.subr.mxu0 0.0
    %146 = vmatpush1.msra.mxu0 %v107
    %147 = vmatprep.subr.mxu0 0.0
    %148 = vmatpush1.msra.mxu0 %v106
    %149 = vmatprep.subr.mxu0 0.0
    %150 = vmatpush1.msra.mxu0 %v105
    %151 = vmatprep.subr.mxu0 0.0
    %152 = vmatpush1.msra.mxu0 %v104
    %153 = vmatprep.subr.mxu0 0.0
    %154 = vmatpush2.msra.mxu0 0.0
    %155 = vmatprep.subr.mxu0 0.0
    %156 = vmatpush2.msra.mxu0 0.0
    %157 = vmatprep.subr.mxu0 0.0
    %158 = vmatpush2.msra.mxu0 0.0
    %159 = vmatprep.subr.mxu0 0.0
    %160 = vmatpush2.msra.mxu0 0.0
    %161 = vmatprep.subr.mxu0 0.0
    %162 = vmatpush2.msra.mxu0 0.0
    %163 = vmatprep.subr.mxu0 0.0
    %164 = vmatpush2.msra.mxu0 0.0
    %165 = vmatprep.subr.mxu0 0.0
    %166 = vmatpush2.msra.mxu0 0.0
    %167 = vmatprep.subr.mxu0 0.0
    %168 = vmatpush2.msra.mxu0 0.0
    %169 = vmatprep.subr.mxu0 0.0
    %170 = vmatpush2.msra.mxu0 0.0
    %171 = vmatprep.subr.mxu0 0.0
    %172 = vmatpush2.msra.mxu0 0.0
    %173 = vmatprep.subr.mxu0 0.0
    %174 = vmatpush2.msra.mxu0 0.0
    %175 = vmatprep.subr.mxu0 0.0
    %176 = vmatpush2.msra.mxu0 0.0
    %177 = vmatprep.subr.mxu0 0.0
    %178 = vmatpush2.msra.mxu0 0.0
    %179 = vmatprep.subr.mxu0 0.0
    %180 = vmatpush2.msra.mxu0 0.0
    %181 = vmatprep.subr.mxu0 0.0
    %182 = vmatpush2.msra.mxu0 0.0
    %183 = vmatprep.subr.mxu0 0.0
    %184 = vmatpush2.msra.mxu0 0.0
    %185 = vmatprep.mubr.f32.mxu0 0.0
    %186 = vmatmul.mubr.f32.gmra.mxu0 %v116
    %v187 = vpop.f32.mrf.mxu0
    %v188 = vadd.f32 %v113, %v187
    %v189 = vpop.f32.mrf.mxu0
    %190 = vmatprep.mubr.f32.mxu0 0.0
    %191 = vmatmul.mubr.f32.gmra.mxu0 %v119
    %v192 = vpop.f32.mrf.mxu0
    %v193 = vadd.f32 %v113, %v192
    %v194 = vpop.f32.mrf.mxu0
    %195 = vdwg.mxu0
    %v196 = vld [vmem:[%s6] sm:$0xff]
    %v197 = vld [vmem:[%s6 + $0x8] sm:$0xff]
    %v198 = vld [vmem:[%s6 + $0x10] sm:$0xff]
    %v199 = vld [vmem:[%s6 + $0x18] sm:$0xff]
    %202 = vrot.lane.b32.xlu0 %v188, 96
    %v203 = vpop.permute.xlu0 %202
    %204 = vrot.lane.b32.xlu0 %v193, 96
    %v205 = vpop.permute.xlu0 %204
    %vm206 = vcmask 130048
    %v207 = vsel %vm206, %v188, 0
    %v209 = vsel %vm206, %v193, 0
    %v211 = vsel %vm206, %v203, 0
    %v213 = vsel %vm206, %v205, 0
    %215 = vmatprep.subr.mxu0 0.0
    %216 = vmatpush1.xpose.msra.mxu0 0.0
    %217 = vmatprep.subr.mxu0 0.0
    %218 = vmatpush1.xpose.msra.mxu0 0.0
    %219 = vmatprep.subr.mxu0 0.0
    %220 = vmatpush1.xpose.msra.mxu0 0.0
    %221 = vmatprep.subr.mxu0 0.0
    %222 = vmatpush1.xpose.msra.mxu0 0.0
    %223 = vmatprep.subr.mxu0 0.0
    %224 = vmatpush1.xpose.msra.mxu0 0.0
    %225 = vmatprep.subr.mxu0 0.0
    %226 = vmatpush1.xpose.msra.mxu0 0.0
    %227 = vmatprep.subr.mxu0 0.0
    %228 = vmatpush1.xpose.msra.mxu0 0.0
    %229 = vmatprep.subr.mxu0 0.0
    %230 = vmatpush1.xpose.msra.mxu0 0.0
    %231 = vmatprep.subr.mxu0 0.0
    %232 = vmatpush1.xpose.msra.mxu0 0.0
    %233 = vmatprep.subr.mxu0 0.0
    %234 = vmatpush1.xpose.msra.mxu0 0.0
    %235 = vmatprep.subr.mxu0 0.0
    %236 = vmatpush1.xpose.msra.mxu0 0.0
    %237 = vmatprep.subr.mxu0 0.0
    %238 = vmatpush1.xpose.msra.mxu0 0.0
    %239 = vmatprep.subr.mxu0 0.0
    %240 = vmatpush1.xpose.msra.mxu0 0.0
    %241 = vmatprep.subr.mxu0 0.0
    %242 = vmatpush1.xpose.msra.mxu0 0.0
    %243 = vmatprep.subr.mxu0 0.0
    %244 = vmatpush1.xpose.msra.mxu0 %v213
    %245 = vmatprep.subr.mxu0 0.0
    %246 = vmatpush1.xpose.msra.mxu0 %v211
    %247 = vmatprep.subr.mxu0 0.0
    %248 = vmatpush2.xpose.msra.mxu0 0.0
    %249 = vmatprep.subr.mxu0 0.0
    %250 = vmatpush2.xpose.msra.mxu0 0.0
    %251 = vmatprep.subr.mxu0 0.0
    %252 = vmatpush2.xpose.msra.mxu0 0.0
    %253 = vmatprep.subr.mxu0 0.0
    %254 = vmatpush2.xpose.msra.mxu0 0.0
    %255 = vmatprep.subr.mxu0 0.0
    %256 = vmatpush2.xpose.msra.mxu0 0.0
    %257 = vmatprep.subr.mxu0 0.0
    %258 = vmatpush2.xpose.msra.mxu0 0.0
    %259 = vmatprep.subr.mxu0 0.0
    %260 = vmatpush2.xpose.msra.mxu0 0.0
    %261 = vmatprep.subr.mxu0 0.0
    %262 = vmatpush2.xpose.msra.mxu0 0.0
    %263 = vmatprep.subr.mxu0 0.0
    %264 = vmatpush2.xpose.msra.mxu0 0.0
    %265 = vmatprep.subr.mxu0 0.0
    %266 = vmatpush2.xpose.msra.mxu0 0.0
    %267 = vmatprep.subr.mxu0 0.0
    %268 = vmatpush2.xpose.msra.mxu0 0.0
    %269 = vmatprep.subr.mxu0 0.0
    %270 = vmatpush2.xpose.msra.mxu0 0.0
    %271 = vmatprep.subr.mxu0 0.0
    %272 = vmatpush2.xpose.msra.mxu0 0.0
    %273 = vmatprep.subr.mxu0 0.0
    %274 = vmatpush2.xpose.msra.mxu0 0.0
    %275 = vmatprep.subr.mxu0 0.0
    %276 = vmatpush2.xpose.msra.mxu0 0.0
    %277 = vmatprep.subr.mxu0 0.0
    %278 = vmatpush2.xpose.msra.mxu0 0.0
    %279 = vmatprep.mubr.f32.mxu0 0.0
    %280 = vmatmul.mubr.f32.gmra.mxu0 %v207
    %v281 = vpop.f32.mrf.mxu0
    %v282 = vadd.f32 %v54, %v281
    %v283 = vpop.f32.mrf.mxu0
    %284 = vmatprep.mubr.f32.mxu0 0.0
    %285 = vmatmul.mubr.f32.gmra.mxu0 %v209
    %v286 = vpop.f32.mrf.mxu0
    %v287 = vadd.f32 %v55, %v286
    %v288 = vpop.f32.mrf.mxu0
    %289 = vdwg.mxu0
    %v290 = vsel %vm206, %v282, -inf
    %291 = vmax.xlane.f32.xlu0 %v290
    %v292 = vpop.xlane.xlu0 %291
    %v293 = vsel %vm206, %v287, -inf
    %294 = vmax.xlane.f32.xlu0 %v293
    %v295 = vpop.xlane.xlu0 %294
    %v296 = vsub.f32 %v282, %v292
    %v297 = vsub.f32 %v287, %v295
    %v298 = vmul.f32 %v296, 1.442695
    %v299 = vpow.pop %v298
    %v300 = vmul.f32 %v297, 1.442695
    %v301 = vpow.pop %v300
    %v302 = vsel %vm206, %v299, 0.0
    %303 = vadd.xlane.f32.xlu0 %v302
    %v304 = vpop.xlane.xlu0 %303
    %v305 = vsel %vm206, %v301, 0.0
    %306 = vadd.xlane.f32.xlu0 %v305
    %v307 = vpop.xlane.xlu0 %306
    %v308 = vrcp.pop %v304
    %v309 = vrcp.pop %v307
    %v310 = vmul.f32 %v299, %v308
    %v311 = vmul.f32 %v301, %v309
    %312 = vrot.lane.b32.xlu0 %v188, 64
    %v313 = vpop.permute.xlu0 %312
    %314 = vrot.lane.b32.xlu0 %v193, 64
    %v315 = vpop.permute.xlu0 %314
    %v319 = vsel %vm206, %v310, 0
    %v322 = vsel %vm206, %v311, 0
    %324 = vmatprep.subr.mxu0 0.0
    %325 = vmatpush1.msra.mxu0 0.0
    %326 = vmatprep.subr.mxu0 0.0
    %327 = vmatpush1.msra.mxu0 0.0
    %328 = vmatprep.subr.mxu0 0.0
    %329 = vmatpush1.msra.mxu0 0.0
    %330 = vmatprep.subr.mxu0 0.0
    %331 = vmatpush1.msra.mxu0 0.0
    %332 = vmatprep.subr.mxu0 0.0
    %333 = vmatpush1.msra.mxu0 0.0
    %334 = vmatprep.subr.mxu0 0.0
    %335 = vmatpush1.msra.mxu0 0.0
    %336 = vmatprep.subr.mxu0 0.0
    %337 = vmatpush1.msra.mxu0 0.0
    %338 = vmatprep.subr.mxu0 0.0
    %339 = vmatpush1.msra.mxu0 0.0
    %340 = vmatprep.subr.mxu0 0.0
    %341 = vmatpush1.msra.mxu0 0.0
    %342 = vmatprep.subr.mxu0 0.0
    %343 = vmatpush1.msra.mxu0 0.0
    %344 = vmatprep.subr.mxu0 0.0
    %345 = vmatpush1.msra.mxu0 0.0
    %346 = vmatprep.subr.mxu0 0.0
    %347 = vmatpush1.msra.mxu0 0.0
    %348 = vmatprep.subr.mxu0 0.0
    %349 = vmatpush1.msra.mxu0 0.0
    %350 = vmatprep.subr.mxu0 0.0
    %351 = vmatpush1.msra.mxu0 0.0
    %352 = vmatprep.subr.mxu0 0.0
    %353 = vmatpush1.msra.mxu0 %v315
    %354 = vmatprep.subr.mxu0 0.0
    %355 = vmatpush1.msra.mxu0 %v313
    %356 = vmatprep.subr.mxu0 0.0
    %357 = vmatpush2.msra.mxu0 0.0
    %358 = vmatprep.subr.mxu0 0.0
    %359 = vmatpush2.msra.mxu0 0.0
    %360 = vmatprep.subr.mxu0 0.0
    %361 = vmatpush2.msra.mxu0 0.0
    %362 = vmatprep.subr.mxu0 0.0
    %363 = vmatpush2.msra.mxu0 0.0
    %364 = vmatprep.subr.mxu0 0.0
    %365 = vmatpush2.msra.mxu0 0.0
    %366 = vmatprep.subr.mxu0 0.0
    %367 = vmatpush2.msra.mxu0 0.0
    %368 = vmatprep.subr.mxu0 0.0
    %369 = vmatpush2.msra.mxu0 0.0
    %370 = vmatprep.subr.mxu0 0.0
    %371 = vmatpush2.msra.mxu0 0.0
    %372 = vmatprep.subr.mxu0 0.0
    %373 = vmatpush2.msra.mxu0 0.0
    %374 = vmatprep.subr.mxu0 0.0
    %375 = vmatpush2.msra.mxu0 0.0
    %376 = vmatprep.subr.mxu0 0.0
    %377 = vmatpush2.msra.mxu0 0.0
    %378 = vmatprep.subr.mxu0 0.0
    %379 = vmatpush2.msra.mxu0 0.0
    %380 = vmatprep.subr.mxu0 0.0
    %381 = vmatpush2.msra.mxu0 0.0
    %382 = vmatprep.subr.mxu0 0.0
    %383 = vmatpush2.msra.mxu0 0.0
    %384 = vmatprep.subr.mxu0 0.0
    %385 = vmatpush2.msra.mxu0 0.0
    %386 = vmatprep.subr.mxu0 0.0
    %387 = vmatpush2.msra.mxu0 0.0
    %388 = vmatprep.mubr.f32.mxu0 0.0
    %389 = vmatmul.mubr.f32.gmra.mxu0 %v319
    %v390 = vpop.f32.mrf.mxu0
    %v391 = vadd.f32 0.0, %v390
    %v392 = vpop.f32.mrf.mxu0
    %393 = vmatprep.mubr.f32.mxu0 0.0
    %394 = vmatmul.mubr.f32.gmra.mxu0 %v322
    %v395 = vpop.f32.mrf.mxu0
    %v396 = vadd.f32 0.0, %v395
    %v397 = vpop.f32.mrf.mxu0
    %398 = vdwg.mxu0
    %399 = vrot.lane.b32.xlu0 %v188, 112
    %v400 = vpop.permute.xlu0 %399
    %401 = vrot.lane.b32.xlu0 %v193, 112
    %v402 = vpop.permute.xlu0 %401
    %403 = vrot.lane.b32.xlu0 %v188, 80
    %v404 = vpop.permute.xlu0 %403
    %405 = vrot.lane.b32.xlu0 %v193, 80
    %v406 = vpop.permute.xlu0 %405
    %v407 = vsel %vm206, %v400, 0
    %v409 = vsel %vm206, %v402, 0
    %v411 = vsel %vm206, %v404, 0
    %v413 = vsel %vm206, %v406, 0
    %415 = vmatprep.subr.mxu0 0.0
    %416 = vmatpush1.xpose.msra.mxu0 0.0
    %417 = vmatprep.subr.mxu0 0.0
    %418 = vmatpush1.xpose.msra.mxu0 0.0
    %419 = vmatprep.subr.mxu0 0.0
    %420 = vmatpush1.xpose.msra.mxu0 0.0
    %421 = vmatprep.subr.mxu0 0.0
    %422 = vmatpush1.xpose.msra.mxu0 0.0
    %423 = vmatprep.subr.mxu0 0.0
    %424 = vmatpush1.xpose.msra.mxu0 0.0
    %425 = vmatprep.subr.mxu0 0.0
    %426 = vmatpush1.xpose.msra.mxu0 0.0
    %427 = vmatprep.subr.mxu0 0.0
    %428 = vmatpush1.xpose.msra.mxu0 0.0
    %429 = vmatprep.subr.mxu0 0.0
    %430 = vmatpush1.xpose.msra.mxu0 0.0
    %431 = vmatprep.subr.mxu0 0.0
    %432 = vmatpush1.xpose.msra.mxu0 0.0
    %433 = vmatprep.subr.mxu0 0.0
    %434 = vmatpush1.xpose.msra.mxu0 0.0
    %435 = vmatprep.subr.mxu0 0.0
    %436 = vmatpush1.xpose.msra.mxu0 0.0
    %437 = vmatprep.subr.mxu0 0.0
    %438 = vmatpush1.xpose.msra.mxu0 0.0
    %439 = vmatprep.subr.mxu0 0.0
    %440 = vmatpush1.xpose.msra.mxu0 0.0
    %441 = vmatprep.subr.mxu0 0.0
    %442 = vmatpush1.xpose.msra.mxu0 0.0
    %443 = vmatprep.subr.mxu0 0.0
    %444 = vmatpush1.xpose.msra.mxu0 %v413
    %445 = vmatprep.subr.mxu0 0.0
    %446 = vmatpush1.xpose.msra.mxu0 %v411
    %447 = vmatprep.subr.mxu0 0.0
    %448 = vmatpush2.xpose.msra.mxu0 0.0
    %449 = vmatprep.subr.mxu0 0.0
    %450 = vmatpush2.xpose.msra.mxu0 0.0
    %451 = vmatprep.subr.mxu0 0.0
    %452 = vmatpush2.xpose.msra.mxu0 0.0
    %453 = vmatprep.subr.mxu0 0.0
    %454 = vmatpush2.xpose.msra.mxu0 0.0
    %455 = vmatprep.subr.mxu0 0.0
    %456 = vmatpush2.xpose.msra.mxu0 0.0
    %457 = vmatprep.subr.mxu0 0.0
    %458 = vmatpush2.xpose.msra.mxu0 0.0
    %459 = vmatprep.subr.mxu0 0.0
    %460 = vmatpush2.xpose.msra.mxu0 0.0
    %461 = vmatprep.subr.mxu0 0.0
    %462 = vmatpush2.xpose.msra.mxu0 0.0
    %463 = vmatprep.subr.mxu0 0.0
    %464 = vmatpush2.xpose.msra.mxu0 0.0
    %465 = vmatprep.subr.mxu0 0.0
    %466 = vmatpush2.xpose.msra.mxu0 0.0
    %467 = vmatprep.subr.mxu0 0.0
    %468 = vmatpush2.xpose.msra.mxu0 0.0
    %469 = vmatprep.subr.mxu0 0.0
    %470 = vmatpush2.xpose.msra.mxu0 0.0
    %471 = vmatprep.subr.mxu0 0.0
    %472 = vmatpush2.xpose.msra.mxu0 0.0
    %473 = vmatprep.subr.mxu0 0.0
    %474 = vmatpush2.xpose.msra.mxu0 0.0
    %475 = vmatprep.subr.mxu0 0.0
    %476 = vmatpush2.xpose.msra.mxu0 0.0
    %477 = vmatprep.subr.mxu0 0.0
    %478 = vmatpush2.xpose.msra.mxu0 0.0
    %479 = vmatprep.mubr.f32.mxu0 0.0
    %480 = vmatmul.mubr.f32.gmra.mxu0 %v407
    %v481 = vpop.f32.mrf.mxu0
    %v482 = vadd.f32 %v54, %v481
    %v483 = vpop.f32.mrf.mxu0
    %484 = vmatprep.mubr.f32.mxu0 0.0
    %485 = vmatmul.mubr.f32.gmra.mxu0 %v409
    %v486 = vpop.f32.mrf.mxu0
    %v487 = vadd.f32 %v55, %v486
    %v488 = vpop.f32.mrf.mxu0
    %489 = vdwg.mxu0
    %v490 = vsel %vm206, %v482, -inf
    %491 = vmax.xlane.f32.xlu0 %v490
    %v492 = vpop.xlane.xlu0 %491
    %v493 = vsel %vm206, %v487, -inf
    %494 = vmax.xlane.f32.xlu0 %v493
    %v495 = vpop.xlane.xlu0 %494
    %v496 = vsub.f32 %v482, %v492
    %v497 = vsub.f32 %v487, %v495
    %v498 = vmul.f32 %v496, 1.442695
    %v499 = vpow.pop %v498
    %v500 = vmul.f32 %v497, 1.442695
    %v501 = vpow.pop %v500
    %v502 = vsel %vm206, %v499, 0.0
    %503 = vadd.xlane.f32.xlu0 %v502
    %v504 = vpop.xlane.xlu0 %503
    %v505 = vsel %vm206, %v501, 0.0
    %506 = vadd.xlane.f32.xlu0 %v505
    %v507 = vpop.xlane.xlu0 %506
    %v508 = vrcp.pop %v504
    %v509 = vrcp.pop %v507
    %v510 = vmul.f32 %v499, %v508
    %v511 = vmul.f32 %v501, %v509
    %512 = vrot.lane.b32.xlu0 %v188, 48
    %v513 = vpop.permute.xlu0 %512
    %514 = vrot.lane.b32.xlu0 %v193, 48
    %v515 = vpop.permute.xlu0 %514
    %v519 = vsel %vm206, %v510, 0
    %v522 = vsel %vm206, %v511, 0
    %524 = vmatprep.subr.mxu0 0.0
    %525 = vmatpush1.msra.mxu0 0.0
    %526 = vmatprep.subr.mxu0 0.0
    %527 = vmatpush1.msra.mxu0 0.0
    %528 = vmatprep.subr.mxu0 0.0
    %529 = vmatpush1.msra.mxu0 0.0
    %530 = vmatprep.subr.mxu0 0.0
    %531 = vmatpush1.msra.mxu0 0.0
    %532 = vmatprep.subr.mxu0 0.0
    %533 = vmatpush1.msra.mxu0 0.0
    %534 = vmatprep.subr.mxu0 0.0
    %535 = vmatpush1.msra.mxu0 0.0
    %536 = vmatprep.subr.mxu0 0.0
    %537 = vmatpush1.msra.mxu0 0.0
    %538 = vmatprep.subr.mxu0 0.0
    %539 = vmatpush1.msra.mxu0 0.0
    %540 = vmatprep.subr.mxu0 0.0
    %541 = vmatpush1.msra.mxu0 0.0
    %542 = vmatprep.subr.mxu0 0.0
    %543 = vmatpush1.msra.mxu0 0.0
    %544 = vmatprep.subr.mxu0 0.0
    %545 = vmatpush1.msra.mxu0 0.0
    %546 = vmatprep.subr.mxu0 0.0
    %547 = vmatpush1.msra.mxu0 0.0
    %548 = vmatprep.subr.mxu0 0.0
    %549 = vmatpush1.msra.mxu0 0.0
    %550 = vmatprep.subr.mxu0 0.0
    %551 = vmatpush1.msra.mxu0 0.0
    %552 = vmatprep.subr.mxu0 0.0
    %553 = vmatpush1.msra.mxu0 %v515
    %554 = vmatprep.subr.mxu0 0.0
    %555 = vmatpush1.msra.mxu0 %v513
    %556 = vmatprep.subr.mxu0 0.0
    %557 = vmatpush2.msra.mxu0 0.0
    %558 = vmatprep.subr.mxu0 0.0
    %559 = vmatpush2.msra.mxu0 0.0
    %560 = vmatprep.subr.mxu0 0.0
    %561 = vmatpush2.msra.mxu0 0.0
    %562 = vmatprep.subr.mxu0 0.0
    %563 = vmatpush2.msra.mxu0 0.0
    %564 = vmatprep.subr.mxu0 0.0
    %565 = vmatpush2.msra.mxu0 0.0
    %566 = vmatprep.subr.mxu0 0.0
    %567 = vmatpush2.msra.mxu0 0.0
    %568 = vmatprep.subr.mxu0 0.0
    %569 = vmatpush2.msra.mxu0 0.0
    %570 = vmatprep.subr.mxu0 0.0
    %571 = vmatpush2.msra.mxu0 0.0
    %572 = vmatprep.subr.mxu0 0.0
    %573 = vmatpush2.msra.mxu0 0.0
    %574 = vmatprep.subr.mxu0 0.0
    %575 = vmatpush2.msra.mxu0 0.0
    %576 = vmatprep.subr.mxu0 0.0
    %577 = vmatpush2.msra.mxu0 0.0
    %578 = vmatprep.subr.mxu0 0.0
    %579 = vmatpush2.msra.mxu0 0.0
    %580 = vmatprep.subr.mxu0 0.0
    %581 = vmatpush2.msra.mxu0 0.0
    %582 = vmatprep.subr.mxu0 0.0
    %583 = vmatpush2.msra.mxu0 0.0
    %584 = vmatprep.subr.mxu0 0.0
    %585 = vmatpush2.msra.mxu0 0.0
    %586 = vmatprep.subr.mxu0 0.0
    %587 = vmatpush2.msra.mxu0 0.0
    %588 = vmatprep.mubr.f32.mxu0 0.0
    %589 = vmatmul.mubr.f32.gmra.mxu0 %v519
    %v590 = vpop.f32.mrf.mxu0
    %v591 = vadd.f32 0.0, %v590
    %v592 = vpop.f32.mrf.mxu0
    %593 = vmatprep.mubr.f32.mxu0 0.0
    %594 = vmatmul.mubr.f32.gmra.mxu0 %v522
    %v595 = vpop.f32.mrf.mxu0
    %v596 = vadd.f32 0.0, %v595
    %v597 = vpop.f32.mrf.mxu0
    %598 = vdwg.mxu0
    %v600 = vsel %vm206, %v591, 0
    %v603 = vsel %vm206, %v596, 0
    %605 = vmatprep.subr.mxu0 0.0
    %606 = vmatpush1.msra.mxu0 0.0
    %607 = vmatprep.subr.mxu0 0.0
    %608 = vmatpush1.msra.mxu0 0.0
    %609 = vmatprep.subr.mxu0 0.0
    %610 = vmatpush1.msra.mxu0 0.0
    %611 = vmatprep.subr.mxu0 0.0
    %612 = vmatpush1.msra.mxu0 0.0
    %613 = vmatprep.subr.mxu0 0.0
    %614 = vmatpush1.msra.mxu0 0.0
    %615 = vmatprep.subr.mxu0 0.0
    %616 = vmatpush1.msra.mxu0 0.0
    %617 = vmatprep.subr.mxu0 0.0
    %618 = vmatpush1.msra.mxu0 0.0
    %619 = vmatprep.subr.mxu0 0.0
    %620 = vmatpush1.msra.mxu0 0.0
    %621 = vmatprep.subr.mxu0 0.0
    %622 = vmatpush1.msra.mxu0 0.0
    %623 = vmatprep.subr.mxu0 0.0
    %624 = vmatpush1.msra.mxu0 0.0
    %625 = vmatprep.subr.mxu0 0.0
    %626 = vmatpush1.msra.mxu0 0.0
    %627 = vmatprep.subr.mxu0 0.0
    %628 = vmatpush1.msra.mxu0 0.0
    %629 = vmatprep.subr.mxu0 0.0
    %630 = vmatpush1.msra.mxu0 0.0
    %631 = vmatprep.subr.mxu0 0.0
    %632 = vmatpush1.msra.mxu0 0.0
    %633 = vmatprep.subr.mxu0 0.0
    %634 = vmatpush1.msra.mxu0 %v199
    %635 = vmatprep.subr.mxu0 0.0
    %636 = vmatpush1.msra.mxu0 %v198
    %637 = vmatprep.subr.mxu0 0.0
    %638 = vmatpush2.msra.mxu0 0.0
    %639 = vmatprep.subr.mxu0 0.0
    %640 = vmatpush2.msra.mxu0 0.0
    %641 = vmatprep.subr.mxu0 0.0
    %642 = vmatpush2.msra.mxu0 0.0
    %643 = vmatprep.subr.mxu0 0.0
    %644 = vmatpush2.msra.mxu0 0.0
    %645 = vmatprep.subr.mxu0 0.0
    %646 = vmatpush2.msra.mxu0 0.0
    %647 = vmatprep.subr.mxu0 0.0
    %648 = vmatpush2.msra.mxu0 0.0
    %649 = vmatprep.subr.mxu0 0.0
    %650 = vmatpush2.msra.mxu0 0.0
    %651 = vmatprep.subr.mxu0 0.0
    %652 = vmatpush2.msra.mxu0 0.0
    %653 = vmatprep.subr.mxu0 0.0
    %654 = vmatpush2.msra.mxu0 0.0
    %655 = vmatprep.subr.mxu0 0.0
    %656 = vmatpush2.msra.mxu0 0.0
    %657 = vmatprep.subr.mxu0 0.0
    %658 = vmatpush2.msra.mxu0 0.0
    %659 = vmatprep.subr.mxu0 0.0
    %660 = vmatpush2.msra.mxu0 0.0
    %661 = vmatprep.subr.mxu0 0.0
    %662 = vmatpush2.msra.mxu0 0.0
    %663 = vmatprep.subr.mxu0 0.0
    %664 = vmatpush2.msra.mxu0 0.0
    %665 = vmatprep.subr.mxu0 0.0
    %666 = vmatpush2.msra.mxu0 0.0
    %667 = vmatprep.subr.mxu0 0.0
    %668 = vmatpush2.msra.mxu0 0.0
    %669 = vmatprep.mubr.f32.mxu0 0.0
    %670 = vmatmul.mubr.f32.gmra.mxu0 %v600
    %v671 = vpop.f32.mrf.mxu0
    %v672 = vadd.f32 0.0, %v671
    %v673 = vpop.f32.mrf.mxu0
    %674 = vmatprep.mubr.f32.mxu0 0.0
    %675 = vmatmul.mubr.f32.gmra.mxu0 %v603
    %v676 = vpop.f32.mrf.mxu0
    %v677 = vadd.f32 0.0, %v676
    %v678 = vpop.f32.mrf.mxu0
    %679 = vdwg.mxu0
    %v681 = vsel %vm206, %v391, 0
    %v684 = vsel %vm206, %v396, 0
    %686 = vmatprep.subr.mxu0 0.0
    %687 = vmatpush1.msra.mxu0 0.0
    %688 = vmatprep.subr.mxu0 0.0
    %689 = vmatpush1.msra.mxu0 0.0
    %690 = vmatprep.subr.mxu0 0.0
    %691 = vmatpush1.msra.mxu0 0.0
    %692 = vmatprep.subr.mxu0 0.0
    %693 = vmatpush1.msra.mxu0 0.0
    %694 = vmatprep.subr.mxu0 0.0
    %695 = vmatpush1.msra.mxu0 0.0
    %696 = vmatprep.subr.mxu0 0.0
    %697 = vmatpush1.msra.mxu0 0.0
    %698 = vmatprep.subr.mxu0 0.0
    %699 = vmatpush1.msra.mxu0 0.0
    %700 = vmatprep.subr.mxu0 0.0
    %701 = vmatpush1.msra.mxu0 0.0
    %702 = vmatprep.subr.mxu0 0.0
    %703 = vmatpush1.msra.mxu0 0.0
    %704 = vmatprep.subr.mxu0 0.0
    %705 = vmatpush1.msra.mxu0 0.0
    %706 = vmatprep.subr.mxu0 0.0
    %707 = vmatpush1.msra.mxu0 0.0
    %708 = vmatprep.subr.mxu0 0.0
    %709 = vmatpush1.msra.mxu0 0.0
    %710 = vmatprep.subr.mxu0 0.0
    %711 = vmatpush1.msra.mxu0 0.0
    %712 = vmatprep.subr.mxu0 0.0
    %713 = vmatpush1.msra.mxu0 0.0
    %714 = vmatprep.subr.mxu0 0.0
    %715 = vmatpush1.msra.mxu0 %v197
    %716 = vmatprep.subr.mxu0 0.0
    %717 = vmatpush1.msra.mxu0 %v196
    %718 = vmatprep.subr.mxu0 0.0
    %719 = vmatpush2.msra.mxu0 0.0
    %720 = vmatprep.subr.mxu0 0.0
    %721 = vmatpush2.msra.mxu0 0.0
    %722 = vmatprep.subr.mxu0 0.0
    %723 = vmatpush2.msra.mxu0 0.0
    %724 = vmatprep.subr.mxu0 0.0
    %725 = vmatpush2.msra.mxu0 0.0
    %726 = vmatprep.subr.mxu0 0.0
    %727 = vmatpush2.msra.mxu0 0.0
    %728 = vmatprep.subr.mxu0 0.0
    %729 = vmatpush2.msra.mxu0 0.0
    %730 = vmatprep.subr.mxu0 0.0
    %731 = vmatpush2.msra.mxu0 0.0
    %732 = vmatprep.subr.mxu0 0.0
    %733 = vmatpush2.msra.mxu0 0.0
    %734 = vmatprep.subr.mxu0 0.0
    %735 = vmatpush2.msra.mxu0 0.0
    %736 = vmatprep.subr.mxu0 0.0
    %737 = vmatpush2.msra.mxu0 0.0
    %738 = vmatprep.subr.mxu0 0.0
    %739 = vmatpush2.msra.mxu0 0.0
    %740 = vmatprep.subr.mxu0 0.0
    %741 = vmatpush2.msra.mxu0 0.0
    %742 = vmatprep.subr.mxu0 0.0
    %743 = vmatpush2.msra.mxu0 0.0
    %744 = vmatprep.subr.mxu0 0.0
    %745 = vmatpush2.msra.mxu0 0.0
    %746 = vmatprep.subr.mxu0 0.0
    %747 = vmatpush2.msra.mxu0 0.0
    %748 = vmatprep.subr.mxu0 0.0
    %749 = vmatpush2.msra.mxu0 0.0
    %750 = vmatprep.mubr.f32.mxu0 0.0
    %751 = vmatmul.mubr.f32.gmra.mxu0 %v681
    %v752 = vpop.f32.mrf.mxu0
    %v753 = vadd.f32 %v672, %v752
    %v754 = vpop.f32.mrf.mxu0
    %755 = vmatprep.mubr.f32.mxu0 0.0
    %756 = vmatmul.mubr.f32.gmra.mxu0 %v684
    %v757 = vpop.f32.mrf.mxu0
    %v758 = vadd.f32 %v677, %v757
    %v759 = vpop.f32.mrf.mxu0
    %760 = vdwg.mxu0
    %v761 = vld [vmem:[%s7] sm:$0x1]
    %v763 = vlaneseq
    %v764 = vshrl.u32 %v763, 7
    %v765 = vsub.s32 0, %v764
    %v766 = vrot.slane %v761, %v765
    %v768 = vadd.f32 %v753, %v766
    %v769 = vadd.f32 %v758, %v766
    %v770 = vadd.f32 %v768, %v102
    %v771 = vadd.f32 %v769, %v103
    %v772 = vld [vmem:[%s8] sm:$0x1]
    %v773 = vld [vmem:[%s9] sm:$0x1]
    %v774 = vsel %vm60, %v770, 0.0
    %775 = vadd.xlane.f32.xlu0 %v774
    %v776 = vpop.xlane.xlu0 %775
    %v777 = vsel %vm60, %v771, 0.0
    %778 = vadd.xlane.f32.xlu0 %v777
    %v779 = vpop.xlane.xlu0 %778
    %v780 = vmul.f32 %v776, %v67
    %v781 = vmul.f32 %v779, %v67
    %v782 = vsub.f32 %v770, %v780
    %v783 = vsub.f32 %v771, %v781
    %v784 = vmul.f32 %v782, %v782
    %v785 = vmul.f32 %v783, %v783
    %v786 = vsel %vm60, %v784, 0.0
    %787 = vadd.xlane.f32.xlu0 %v786
    %v788 = vpop.xlane.xlu0 %787
    %v789 = vsel %vm60, %v785, 0.0
    %790 = vadd.xlane.f32.xlu0 %v789
    %v791 = vpop.xlane.xlu0 %790
    %v792 = vmul.f32 %v788, %v67
    %v793 = vmul.f32 %v791, %v67
    %v794 = vadd.f32 %v792, 1e-12
    %v795 = vadd.f32 %v793, 1e-12
    %v796 = vrsqrt.pop %v794
    %v797 = vrsqrt.pop %v795
    %v798 = vmul.f32 %v782, %v796
    %v799 = vmul.f32 %v783, %v797
    %v801 = vlaneseq
    %v802 = vshrl.u32 %v801, 7
    %v803 = vsub.s32 0, %v802
    %v804 = vrot.slane %v772, %v803
    %v806 = vmul.f32 %v798, %v804
    %v807 = vmul.f32 %v799, %v804
    %v809 = vlaneseq
    %v810 = vshrl.u32 %v809, 7
    %v811 = vsub.s32 0, %v810
    %v812 = vrot.slane %v773, %v811
    %v814 = vadd.f32 %v806, %v812
    %v815 = vadd.f32 %v807, %v812
    %v816 = vld [vmem:[%s10] sm:$0xff]
    %v817 = vld [vmem:[%s10 + $0x8] sm:$0xff]
    %v818 = vld [vmem:[%s10 + $0x10] sm:$0xff]
    %v819 = vld [vmem:[%s10 + $0x18] sm:$0xff]
    %v820 = vld [vmem:[%s11] sm:$0x1]
    %v822 = vlaneseq
    %v823 = vshrl.u32 %v822, 7
    %v824 = vsub.s32 0, %v823
    %v825 = vrot.slane %v820, %v824
    %v828 = vsel %vm60, %v814, 0
    %v831 = vsel %vm60, %v815, 0
    %833 = vmatprep.subr.mxu0 0.0
    %834 = vmatpush1.msra.mxu0 0.0
    %835 = vmatprep.subr.mxu0 0.0
    %836 = vmatpush1.msra.mxu0 0.0
    %837 = vmatprep.subr.mxu0 0.0
    %838 = vmatpush1.msra.mxu0 0.0
    %839 = vmatprep.subr.mxu0 0.0
    %840 = vmatpush1.msra.mxu0 0.0
    %841 = vmatprep.subr.mxu0 0.0
    %842 = vmatpush1.msra.mxu0 0.0
    %843 = vmatprep.subr.mxu0 0.0
    %844 = vmatpush1.msra.mxu0 0.0
    %845 = vmatprep.subr.mxu0 0.0
    %846 = vmatpush1.msra.mxu0 0.0
    %847 = vmatprep.subr.mxu0 0.0
    %848 = vmatpush1.msra.mxu0 0.0
    %849 = vmatprep.subr.mxu0 0.0
    %850 = vmatpush1.msra.mxu0 0.0
    %851 = vmatprep.subr.mxu0 0.0
    %852 = vmatpush1.msra.mxu0 0.0
    %853 = vmatprep.subr.mxu0 0.0
    %854 = vmatpush1.msra.mxu0 0.0
    %855 = vmatprep.subr.mxu0 0.0
    %856 = vmatpush1.msra.mxu0 0.0
    %857 = vmatprep.subr.mxu0 0.0
    %858 = vmatpush1.msra.mxu0 %v819
    %859 = vmatprep.subr.mxu0 0.0
    %860 = vmatpush1.msra.mxu0 %v818
    %861 = vmatprep.subr.mxu0 0.0
    %862 = vmatpush1.msra.mxu0 %v817
    %863 = vmatprep.subr.mxu0 0.0
    %864 = vmatpush1.msra.mxu0 %v816
    %865 = vmatprep.subr.mxu0 0.0
    %866 = vmatpush2.msra.mxu0 0.0
    %867 = vmatprep.subr.mxu0 0.0
    %868 = vmatpush2.msra.mxu0 0.0
    %869 = vmatprep.subr.mxu0 0.0
    %870 = vmatpush2.msra.mxu0 0.0
    %871 = vmatprep.subr.mxu0 0.0
    %872 = vmatpush2.msra.mxu0 0.0
    %873 = vmatprep.subr.mxu0 0.0
    %874 = vmatpush2.msra.mxu0 0.0
    %875 = vmatprep.subr.mxu0 0.0
    %876 = vmatpush2.msra.mxu0 0.0
    %877 = vmatprep.subr.mxu0 0.0
    %878 = vmatpush2.msra.mxu0 0.0
    %879 = vmatprep.subr.mxu0 0.0
    %880 = vmatpush2.msra.mxu0 0.0
    %881 = vmatprep.subr.mxu0 0.0
    %882 = vmatpush2.msra.mxu0 0.0
    %883 = vmatprep.subr.mxu0 0.0
    %884 = vmatpush2.msra.mxu0 0.0
    %885 = vmatprep.subr.mxu0 0.0
    %886 = vmatpush2.msra.mxu0 0.0
    %887 = vmatprep.subr.mxu0 0.0
    %888 = vmatpush2.msra.mxu0 0.0
    %889 = vmatprep.subr.mxu0 0.0
    %890 = vmatpush2.msra.mxu0 0.0
    %891 = vmatprep.subr.mxu0 0.0
    %892 = vmatpush2.msra.mxu0 0.0
    %893 = vmatprep.subr.mxu0 0.0
    %894 = vmatpush2.msra.mxu0 0.0
    %895 = vmatprep.subr.mxu0 0.0
    %896 = vmatpush2.msra.mxu0 0.0
    %897 = vmatprep.mubr.f32.mxu0 0.0
    %898 = vmatmul.mubr.f32.gmra.mxu0 %v828
    %v899 = vpop.f32.mrf.mxu0
    %v900 = vadd.f32 %v825, %v899
    %v901 = vpop.f32.mrf.mxu0
    %902 = vmatprep.mubr.f32.mxu0 0.0
    %903 = vmatmul.mubr.f32.gmra.mxu0 %v831
    %v904 = vpop.f32.mrf.mxu0
    %v905 = vadd.f32 %v825, %v904
    %v906 = vpop.f32.mrf.mxu0
    %907 = vdwg.mxu0
    %v908 = vmul.f32 %v900, %v900
    %v909 = vmul.f32 %v905, %v905
    %v910 = vmul.f32 %v900, %v908
    %v911 = vmul.f32 %v905, %v909
    %v912 = vmul.f32 %v910, 0.044715
    %v913 = vmul.f32 %v911, 0.044715
    %v914 = vadd.f32 %v900, %v912
    %v915 = vadd.f32 %v905, %v913
    %v916 = vmul.f32 %v914, 0.7978846
    %v917 = vmul.f32 %v915, 0.7978846
    %v918 = vtanh.pop %v916
    %v919 = vtanh.pop %v917
    %v920 = vadd.f32 %v918, 1.0
    %v921 = vadd.f32 %v919, 1.0
    %v922 = vmul.f32 %v920, 0.5
    %v923 = vmul.f32 %v921, 0.5
    %v924 = vmul.f32 %v900, %v922
    %v925 = vmul.f32 %v905, %v923
    %v926 = vld [vmem:[%s12] sm:$0xff]
    %v927 = vld [vmem:[%s12 + $0x8] sm:$0xff]
    %v928 = vld [vmem:[%s12 + $0x10] sm:$0xff]
    %v929 = vld [vmem:[%s12 + $0x18] sm:$0xff]
    %v930 = vld [vmem:[%s12 + $0x20] sm:$0xff]
    %v931 = vld [vmem:[%s12 + $0x28] sm:$0xff]
    %v932 = vld [vmem:[%s12 + $0x30] sm:$0xff]
    %v933 = vld [vmem:[%s12 + $0x38] sm:$0xff]
    %v934 = vld [vmem:[%s13] sm:$0x1]
    %v936 = vlaneseq
    %v937 = vshrl.u32 %v936, 7
    %v938 = vsub.s32 0, %v937
    %v939 = vrot.slane %v934, %v938
    %vm941 = vcmask 523264
    %v943 = vsel %vm941, %v924, 0
    %v946 = vsel %vm941, %v925, 0
    %948 = vmatprep.subr.mxu0 0.0
    %949 = vmatpush1.msra.mxu0 0.0
    %950 = vmatprep.subr.mxu0 0.0
    %951 = vmatpush1.msra.mxu0 0.0
    %952 = vmatprep.subr.mxu0 0.0
    %953 = vmatpush1.msra.mxu0 0.0
    %954 = vmatprep.subr.mxu0 0.0
    %955 = vmatpush1.msra.mxu0 0.0
    %956 = vmatprep.subr.mxu0 0.0
    %957 = vmatpush1.msra.mxu0 0.0
    %958 = vmatprep.subr.mxu0 0.0
    %959 = vmatpush1.msra.mxu0 0.0
    %960 = vmatprep.subr.mxu0 0.0
    %961 = vmatpush1.msra.mxu0 0.0
    %962 = vmatprep.subr.mxu0 0.0
    %963 = vmatpush1.msra.mxu0 0.0
    %964 = vmatprep.subr.mxu0 0.0
    %965 = vmatpush1.msra.mxu0 %v933
    %966 = vmatprep.subr.mxu0 0.0
    %967 = vmatpush1.msra.mxu0 %v932
    %968 = vmatprep.subr.mxu0 0.0
    %969 = vmatpush1.msra.mxu0 %v931
    %970 = vmatprep.subr.mxu0 0.0
    %971 = vmatpush1.msra.mxu0 %v930
    %972 = vmatprep.subr.mxu0 0.0
    %973 = vmatpush1.msra.mxu0 %v929
    %974 = vmatprep.subr.mxu0 0.0
    %975 = vmatpush1.msra.mxu0 %v928
    %976 = vmatprep.subr.mxu0 0.0
    %977 = vmatpush1.msra.mxu0 %v927
    %978 = vmatprep.subr.mxu0 0.0
    %979 = vmatpush1.msra.mxu0 %v926
    %980 = vmatprep.subr.mxu0 0.0
    %981 = vmatpush2.msra.mxu0 0.0
    %982 = vmatprep.subr.mxu0 0.0
    %983 = vmatpush2.msra.mxu0 0.0
    %984 = vmatprep.subr.mxu0 0.0
    %985 = vmatpush2.msra.mxu0 0.0
    %986 = vmatprep.subr.mxu0 0.0
    %987 = vmatpush2.msra.mxu0 0.0
    %988 = vmatprep.subr.mxu0 0.0
    %989 = vmatpush2.msra.mxu0 0.0
    %990 = vmatprep.subr.mxu0 0.0
    %991 = vmatpush2.msra.mxu0 0.0
    %992 = vmatprep.subr.mxu0 0.0
    %993 = vmatpush2.msra.mxu0 0.0
    %994 = vmatprep.subr.mxu0 0.0
    %995 = vmatpush2.msra.mxu0 0.0
    %996 = vmatprep.subr.mxu0 0.0
    %997 = vmatpush2.msra.mxu0 0.0
    %998 = vmatprep.subr.mxu0 0.0
    %999 = vmatpush2.msra.mxu0 0.0
    %1000 = vmatprep.subr.mxu0 0.0
    %1001 = vmatpush2.msra.mxu0 0.0
    %1002 = vmatprep.subr.mxu0 0.0
    %1003 = vmatpush2.msra.mxu0 0.0
    %1004 = vmatprep.subr.mxu0 0.0
    %1005 = vmatpush2.msra.mxu0 0.0
    %1006 = vmatprep.subr.mxu0 0.0
    %1007 = vmatpush2.msra.mxu0 0.0
    %1008 = vmatprep.subr.mxu0 0.0
    %1009 = vmatpush2.msra.mxu0 0.0
    %1010 = vmatprep.subr.mxu0 0.0
    %1011 = vmatpush2.msra.mxu0 0.0
    %1012 = vmatprep.mubr.f32.mxu0 0.0
    %1013 = vmatmul.mubr.f32.gmra.mxu0 %v943
    %v1014 = vpop.f32.mrf.mxu0
    %v1015 = vadd.f32 %v939, %v1014
    %v1016 = vpop.f32.mrf.mxu0
    %1017 = vmatprep.mubr.f32.mxu0 0.0
    %1018 = vmatmul.mubr.f32.gmra.mxu0 %v946
    %v1019 = vpop.f32.mrf.mxu0
    %v1020 = vadd.f32 %v939, %v1019
    %v1021 = vpop.f32.mrf.mxu0
    %1022 = vdwg.mxu0
    %v1023 = vadd.f32 %v1015, %v814
    %v1024 = vadd.f32 %v1020, %v815
    %v1025 = vld [vmem:[%s14] sm:$0x1]
    %v1026 = vld [vmem:[%s15] sm:$0x1]
    %v1027 = vsel %vm60, %v1023, 0.0
    %1028 = vadd.xlane.f32.xlu0 %v1027
    %v1029 = vpop.xlane.xlu0 %1028
    %v1030 = vsel %vm60, %v1024, 0.0
    %1031 = vadd.xlane.f32.xlu0 %v1030
    %v1032 = vpop.xlane.xlu0 %1031
    %v1033 = vmul.f32 %v1029, %v67
    %v1034 = vmul.f32 %v1032, %v67
    %v1035 = vsub.f32 %v1023, %v1033
    %v1036 = vsub.f32 %v1024, %v1034
    %v1037 = vmul.f32 %v1035, %v1035
    %v1038 = vmul.f32 %v1036, %v1036
    %v1039 = vsel %vm60, %v1037, 0.0
    %1040 = vadd.xlane.f32.xlu0 %v1039
    %v1041 = vpop.xlane.xlu0 %1040
    %v1042 = vsel %vm60, %v1038, 0.0
    %1043 = vadd.xlane.f32.xlu0 %v1042
    %v1044 = vpop.xlane.xlu0 %1043
    %v1045 = vmul.f32 %v1041, %v67
    %v1046 = vmul.f32 %v1044, %v67
    %v1047 = vadd.f32 %v1045, 1e-12
    %v1048 = vadd.f32 %v1046, 1e-12
    %v1049 = vrsqrt.pop %v1047
    %v1050 = vrsqrt.pop %v1048
    %v1051 = vmul.f32 %v1035, %v1049
    %v1052 = vmul.f32 %v1036, %v1050
    %v1054 = vlaneseq
    %v1055 = vshrl.u32 %v1054, 7
    %v1056 = vsub.s32 0, %v1055
    %v1057 = vrot.slane %v1025, %v1056
    %v1059 = vmul.f32 %v1051, %v1057
    %v1060 = vmul.f32 %v1052, %v1057
    %v1062 = vlaneseq
    %v1063 = vshrl.u32 %v1062, 7
    %v1064 = vsub.s32 0, %v1063
    %v1065 = vrot.slane %v1026, %v1064
    %v1067 = vadd.f32 %v1059, %v1065
    %v1068 = vadd.f32 %v1060, %v1065
    %s1069 = scalar_lea.vmem %s4, 32
    %v1070 = vld [vmem:[%s1069] sm:$0xff]
    %v1071 = vld [vmem:[%s1069 + $0x8] sm:$0xff]
    %v1072 = vld [vmem:[%s1069 + $0x10] sm:$0xff]
    %v1073 = vld [vmem:[%s1069 + $0x18] sm:$0xff]
    %s1074 = scalar_lea.vmem %s5, 1
    %v1075 = vld [vmem:[%s1074] sm:$0x1]
    %v1077 = vlaneseq
    %v1078 = vshrl.u32 %v1077, 7
    %v1079 = vsub.s32 0, %v1078
    %v1080 = vrot.slane %v1075, %v1079
    %v1083 = vsel %vm60, %v1067, 0
    %v1086 = vsel %vm60, %v1068, 0
    %1088 = vmatprep.subr.mxu0 0.0
    %1089 = vmatpush1.msra.mxu0 0.0
    %1090 = vmatprep.subr.mxu0 0.0
    %1091 = vmatpush1.msra.mxu0 0.0
    %1092 = vmatprep.subr.mxu0 0.0
    %1093 = vmatpush1.msra.mxu0 0.0
    %1094 = vmatprep.subr.mxu0 0.0
    %1095 = vmatpush1.msra.mxu0 0.0
    %1096 = vmatprep.subr.mxu0 0.0
    %1097 = vmatpush1.msra.mxu0 0.0
    %1098 = vmatprep.subr.mxu0 0.0
    %1099 = vmatpush1.msra.mxu0 0.0
    %1100 = vmatprep.subr.mxu0 0.0
    %1101 = vmatpush1.msra.mxu0 0.0
    %1102 = vmatprep.subr.mxu0 0.0
    %1103 = vmatpush1.msra.mxu0 0.0
    %1104 = vmatprep.subr.mxu0 0.0
    %1105 = vmatpush1.msra.mxu0 0.0
    %1106 = vmatprep.subr.mxu0 0.0
    %1107 = vmatpush1.msra.mxu0 0.0
    %1108 = vmatprep.subr.mxu0 0.0
    %1109 = vmatpush1.msra.mxu0 0.0
    %1110 = vmatprep.subr.mxu0 0.0
    %1111 = vmatpush1.msra.mxu0 0.0
    %1112 = vmatprep.subr.mxu0 0.0
    %1113 = vmatpush1.msra.mxu0 %v1073
    %1114 = vmatprep.subr.mxu0 0.0
    %1115 = vmatpush1.msra.mxu0 %v1072
    %1116 = vmatprep.subr.mxu0 0.0
    %1117 = vmatpush1.msra.mxu0 %v1071
    %1118 = vmatprep.subr.mxu0 0.0
    %1119 = vmatpush1.msra.mxu0 %v1070
    %1120 = vmatprep.subr.mxu0 0.0
    %1121 = vmatpush2.msra.mxu0 0.0
    %1122 = vmatprep.subr.mxu0 0.0
    %1123 = vmatpush2.msra.mxu0 0.0
    %1124 = vmatprep.subr.mxu0 0.0
    %1125 = vmatpush2.msra.mxu0 0.0
    %1126 = vmatprep.subr.mxu0 0.0
    %1127 = vmatpush2.msra.mxu0 0.0
    %1128 = vmatprep.subr.mxu0 0.0
    %1129 = vmatpush2.msra.mxu0 0.0
    %1130 = vmatprep.subr.mxu0 0.0
    %1131 = vmatpush2.msra.mxu0 0.0
    %1132 = vmatprep.subr.mxu0 0.0
    %1133 = vmatpush2.msra.mxu0 0.0
    %1134 = vmatprep.subr.mxu0 0.0
    %1135 = vmatpush2.msra.mxu0 0.0
    %1136 = vmatprep.subr.mxu0 0.0
    %1137 = vmatpush2.msra.mxu0 0.0
    %1138 = vmatprep.subr.mxu0 0.0
    %1139 = vmatpush2.msra.mxu0 0.0
    %1140 = vmatprep.subr.mxu0 0.0
    %1141 = vmatpush2.msra.mxu0 0.0
    %1142 = vmatprep.subr.mxu0 0.0
    %1143 = vmatpush2.msra.mxu0 0.0
    %1144 = vmatprep.subr.mxu0 0.0
    %1145 = vmatpush2.msra.mxu0 0.0
    %1146 = vmatprep.subr.mxu0 0.0
    %1147 = vmatpush2.msra.mxu0 0.0
    %1148 = vmatprep.subr.mxu0 0.0
    %1149 = vmatpush2.msra.mxu0 0.0
    %1150 = vmatprep.subr.mxu0 0.0
    %1151 = vmatpush2.msra.mxu0 0.0
    %1152 = vmatprep.mubr.f32.mxu0 0.0
    %1153 = vmatmul.mubr.f32.gmra.mxu0 %v1083
    %v1154 = vpop.f32.mrf.mxu0
    %v1155 = vadd.f32 %v1080, %v1154
    %v1156 = vpop.f32.mrf.mxu0
    %1157 = vmatprep.mubr.f32.mxu0 0.0
    %1158 = vmatmul.mubr.f32.gmra.mxu0 %v1086
    %v1159 = vpop.f32.mrf.mxu0
    %v1160 = vadd.f32 %v1080, %v1159
    %v1161 = vpop.f32.mrf.mxu0
    %1162 = vdwg.mxu0
    %s1163 = scalar_lea.vmem %s6, 32
    %v1164 = vld [vmem:[%s1163] sm:$0xff]
    %v1165 = vld [vmem:[%s1163 + $0x8] sm:$0xff]
    %v1166 = vld [vmem:[%s1163 + $0x10] sm:$0xff]
    %v1167 = vld [vmem:[%s1163 + $0x18] sm:$0xff]
    %1170 = vrot.lane.b32.xlu0 %v1155, 96
    %v1171 = vpop.permute.xlu0 %1170
    %1172 = vrot.lane.b32.xlu0 %v1160, 96
    %v1173 = vpop.permute.xlu0 %1172
    %v1174 = vsel %vm206, %v1155, 0
    %v1176 = vsel %vm206, %v1160, 0
    %v1178 = vsel %vm206, %v1171, 0
    %v1180 = vsel %vm206, %v1173, 0
    %1182 = vmatprep.subr.mxu0 0.0
    %1183 = vmatpush1.xpose.msra.mxu0 0.0
    %1184 = vmatprep.subr.mxu0 0.0
    %1185 = vmatpush1.xpose.msra.mxu0 0.0
    %1186 = vmatprep.subr.mxu0 0.0
    %1187 = vmatpush1.xpose.msra.mxu0 0.0
    %1188 = vmatprep.subr.mxu0 0.0
    %1189 = vmatpush1.xpose.msra.mxu0 0.0
    %1190 = vmatprep.subr.mxu0 0.0
    %1191 = vmatpush1.xpose.msra.mxu0 0.0
    %1192 = vmatprep.subr.mxu0 0.0
    %1193 = vmatpush1.xpose.msra.mxu0 0.0
    %1194 = vmatprep.subr.mxu0 0.0
    %1195 = vmatpush1.xpose.msra.mxu0 0.0
    %1196 = vmatprep.subr.mxu0 0.0
    %1197 = vmatpush1.xpose.msra.mxu0 0.0
    %1198 = vmatprep.subr.mxu0 0.0
    %1199 = vmatpush1.xpose.msra.mxu0 0.0
    %1200 = vmatprep.subr.mxu0 0.0
    %1201 = vmatpush1.xpose.msra.mxu0 0.0
    %1202 = vmatprep.subr.mxu0 0.0
    %1203 = vmatpush1.xpose.msra.mxu0 0.0
    %1204 = vmatprep.subr.mxu0 0.0
    %1205 = vmatpush1.xpose.msra.mxu0 0.0
    %1206 = vmatprep.subr.mxu0 0.0
    %1207 = vmatpush1.xpose.msra.mxu0 0.0
    %1208 = vmatprep.subr.mxu0 0.0
    %1209 = vmatpush1.xpose.msra.mxu0 0.0
    %1210 = vmatprep.subr.mxu0 0.0
    %1211 = vmatpush1.xpose.msra.mxu0 %v1180
    %1212 = vmatprep.subr.mxu0 0.0
    %1213 = vmatpush1.xpose.msra.mxu0 %v1178
    %1214 = vmatprep.subr.mxu0 0.0
    %1215 = vmatpush2.xpose.msra.mxu0 0.0
    %1216 = vmatprep.subr.mxu0 0.0
    %1217 = vmatpush2.xpose.msra.mxu0 0.0
    %1218 = vmatprep.subr.mxu0 0.0
    %1219 = vmatpush2.xpose.msra.mxu0 0.0
    %1220 = vmatprep.subr.mxu0 0.0
    %1221 = vmatpush2.xpose.msra.mxu0 0.0
    %1222 = vmatprep.subr.mxu0 0.0
    %1223 = vmatpush2.xpose.msra.mxu0 0.0
    %1224 = vmatprep.subr.mxu0 0.0
    %1225 = vmatpush2.xpose.msra.mxu0 0.0
    %1226 = vmatprep.subr.mxu0 0.0
    %1227 = vmatpush2.xpose.msra.mxu0 0.0
    %1228 = vmatprep.subr.mxu0 0.0
    %1229 = vmatpush2.xpose.msra.mxu0 0.0
    %1230 = vmatprep.subr.mxu0 0.0
    %1231 = vmatpush2.xpose.msra.mxu0 0.0
    %1232 = vmatprep.subr.mxu0 0.0
    %1233 = vmatpush2.xpose.msra.mxu0 0.0
    %1234 = vmatprep.subr.mxu0 0.0
    %1235 = vmatpush2.xpose.msra.mxu0 0.0
    %1236 = vmatprep.subr.mxu0 0.0
    %1237 = vmatpush2.xpose.msra.mxu0 0.0
    %1238 = vmatprep.subr.mxu0 0.0
    %1239 = vmatpush2.xpose.msra.mxu0 0.0
    %1240 = vmatprep.subr.mxu0 0.0
    %1241 = vmatpush2.xpose.msra.mxu0 0.0
    %1242 = vmatprep.subr.mxu0 0.0
    %1243 = vmatpush2.xpose.msra.mxu0 0.0
    %1244 = vmatprep.subr.mxu0 0.0
    %1245 = vmatpush2.xpose.msra.mxu0 0.0
    %1246 = vmatprep.mubr.f32.mxu0 0.0
    %1247 = vmatmul.mubr.f32.gmra.mxu0 %v1174
    %v1248 = vpop.f32.mrf.mxu0
    %v1249 = vadd.f32 %v54, %v1248
    %v1250 = vpop.f32.mrf.mxu0
    %1251 = vmatprep.mubr.f32.mxu0 0.0
    %1252 = vmatmul.mubr.f32.gmra.mxu0 %v1176
    %v1253 = vpop.f32.mrf.mxu0
    %v1254 = vadd.f32 %v55, %v1253
    %v1255 = vpop.f32.mrf.mxu0
    %1256 = vdwg.mxu0
    %v1257 = vsel %vm206, %v1249, -inf
    %1258 = vmax.xlane.f32.xlu0 %v1257
    %v1259 = vpop.xlane.xlu0 %1258
    %v1260 = vsel %vm206, %v1254, -inf
    %1261 = vmax.xlane.f32.xlu0 %v1260
    %v1262 = vpop.xlane.xlu0 %1261
    %v1263 = vsub.f32 %v1249, %v1259
    %v1264 = vsub.f32 %v1254, %v1262
    %v1265 = vmul.f32 %v1263, 1.442695
    %v1266 = vpow.pop %v1265
    %v1267 = vmul.f32 %v1264, 1.442695
    %v1268 = vpow.pop %v1267
    %v1269 = vsel %vm206, %v1266, 0.0
    %1270 = vadd.xlane.f32.xlu0 %v1269
    %v1271 = vpop.xlane.xlu0 %1270
    %v1272 = vsel %vm206, %v1268, 0.0
    %1273 = vadd.xlane.f32.xlu0 %v1272
    %v1274 = vpop.xlane.xlu0 %1273
    %v1275 = vrcp.pop %v1271
    %v1276 = vrcp.pop %v1274
    %v1277 = vmul.f32 %v1266, %v1275
    %v1278 = vmul.f32 %v1268, %v1276
    %1279 = vrot.lane.b32.xlu0 %v1155, 64
    %v1280 = vpop.permute.xlu0 %1279
    %1281 = vrot.lane.b32.xlu0 %v1160, 64
    %v1282 = vpop.permute.xlu0 %1281
    %v1286 = vsel %vm206, %v1277, 0
    %v1289 = vsel %vm206, %v1278, 0
    %1291 = vmatprep.subr.mxu0 0.0
    %1292 = vmatpush1.msra.mxu0 0.0
    %1293 = vmatprep.subr.mxu0 0.0
    %1294 = vmatpush1.msra.mxu0 0.0
    %1295 = vmatprep.subr.mxu0 0.0
    %1296 = vmatpush1.msra.mxu0 0.0
    %1297 = vmatprep.subr.mxu0 0.0
    %1298 = vmatpush1.msra.mxu0 0.0
    %1299 = vmatprep.subr.mxu0 0.0
    %1300 = vmatpush1.msra.mxu0 0.0
    %1301 = vmatprep.subr.mxu0 0.0
    %1302 = vmatpush1.msra.mxu0 0.0
    %1303 = vmatprep.subr.mxu0 0.0
    %1304 = vmatpush1.msra.mxu0 0.0
    %1305 = vmatprep.subr.mxu0 0.0
    %1306 = vmatpush1.msra.mxu0 0.0
    %1307 = vmatprep.subr.mxu0 0.0
    %1308 = vmatpush1.msra.mxu0 0.0
    %1309 = vmatprep.subr.mxu0 0.0
    %1310 = vmatpush1.msra.mxu0 0.0
    %1311 = vmatprep.subr.mxu0 0.0
    %1312 = vmatpush1.msra.mxu0 0.0
    %1313 = vmatprep.subr.mxu0 0.0
    %1314 = vmatpush1.msra.mxu0 0.0
    %1315 = vmatprep.subr.mxu0 0.0
    %1316 = vmatpush1.msra.mxu0 0.0
    %1317 = vmatprep.subr.mxu0 0.0
    %1318 = vmatpush1.msra.mxu0 0.0
    %1319 = vmatprep.subr.mxu0 0.0
    %1320 = vmatpush1.msra.mxu0 %v1282
    %1321 = vmatprep.subr.mxu0 0.0
    %1322 = vmatpush1.msra.mxu0 %v1280
    %1323 = vmatprep.subr.mxu0 0.0
    %1324 = vmatpush2.msra.mxu0 0.0
    %1325 = vmatprep.subr.mxu0 0.0
    %1326 = vmatpush2.msra.mxu0 0.0
    %1327 = vmatprep.subr.mxu0 0.0
    %1328 = vmatpush2.msra.mxu0 0.0
    %1329 = vmatprep.subr.mxu0 0.0
    %1330 = vmatpush2.msra.mxu0 0.0
    %1331 = vmatprep.subr.mxu0 0.0
    %1332 = vmatpush2.msra.mxu0 0.0
    %1333 = vmatprep.subr.mxu0 0.0
    %1334 = vmatpush2.msra.mxu0 0.0
    %1335 = vmatprep.subr.mxu0 0.0
    %1336 = vmatpush2.msra.mxu0 0.0
    %1337 = vmatprep.subr.mxu0 0.0
    %1338 = vmatpush2.msra.mxu0 0.0
    %1339 = vmatprep.subr.mxu0 0.0
    %1340 = vmatpush2.msra.mxu0 0.0
    %1341 = vmatprep.subr.mxu0 0.0
    %1342 = vmatpush2.msra.mxu0 0.0
    %1343 = vmatprep.subr.mxu0 0.0
    %1344 = vmatpush2.msra.mxu0 0.0
    %1345 = vmatprep.subr.mxu0 0.0
    %1346 = vmatpush2.msra.mxu0 0.0
    %1347 = vmatprep.subr.mxu0 0.0
    %1348 = vmatpush2.msra.mxu0 0.0
    %1349 = vmatprep.subr.mxu0 0.0
    %1350 = vmatpush2.msra.mxu0 0.0
    %1351 = vmatprep.subr.mxu0 0.0
    %1352 = vmatpush2.msra.mxu0 0.0
    %1353 = vmatprep.subr.mxu0 0.0
    %1354 = vmatpush2.msra.mxu0 0.0
    %1355 = vmatprep.mubr.f32.mxu0 0.0
    %1356 = vmatmul.mubr.f32.gmra.mxu0 %v1286
    %v1357 = vpop.f32.mrf.mxu0
    %v1358 = vadd.f32 0.0, %v1357
    %v1359 = vpop.f32.mrf.mxu0
    %1360 = vmatprep.mubr.f32.mxu0 0.0
    %1361 = vmatmul.mubr.f32.gmra.mxu0 %v1289
    %v1362 = vpop.f32.mrf.mxu0
    %v1363 = vadd.f32 0.0, %v1362
    %v1364 = vpop.f32.mrf.mxu0
    %1365 = vdwg.mxu0
    %1366 = vrot.lane.b32.xlu0 %v1155, 112
    %v1367 = vpop.permute.xlu0 %1366
    %1368 = vrot.lane.b32.xlu0 %v1160, 112
    %v1369 = vpop.permute.xlu0 %1368
    %1370 = vrot.lane.b32.xlu0 %v1155, 80
    %v1371 = vpop.permute.xlu0 %1370
    %1372 = vrot.lane.b32.xlu0 %v1160, 80
    %v1373 = vpop.permute.xlu0 %1372
    %v1374 = vsel %vm206, %v1367, 0
    %v1376 = vsel %vm206, %v1369, 0
    %v1378 = vsel %vm206, %v1371, 0
    %v1380 = vsel %vm206, %v1373, 0
    %1382 = vmatprep.subr.mxu0 0.0
    %1383 = vmatpush1.xpose.msra.mxu0 0.0
    %1384 = vmatprep.subr.mxu0 0.0
    %1385 = vmatpush1.xpose.msra.mxu0 0.0
    %1386 = vmatprep.subr.mxu0 0.0
    %1387 = vmatpush1.xpose.msra.mxu0 0.0
    %1388 = vmatprep.subr.mxu0 0.0
    %1389 = vmatpush1.xpose.msra.mxu0 0.0
    %1390 = vmatprep.subr.mxu0 0.0
    %1391 = vmatpush1.xpose.msra.mxu0 0.0
    %1392 = vmatprep.subr.mxu0 0.0
    %1393 = vmatpush1.xpose.msra.mxu0 0.0
    %1394 = vmatprep.subr.mxu0 0.0
    %1395 = vmatpush1.xpose.msra.mxu0 0.0
    %1396 = vmatprep.subr.mxu0 0.0
    %1397 = vmatpush1.xpose.msra.mxu0 0.0
    %1398 = vmatprep.subr.mxu0 0.0
    %1399 = vmatpush1.xpose.msra.mxu0 0.0
    %1400 = vmatprep.subr.mxu0 0.0
    %1401 = vmatpush1.xpose.msra.mxu0 0.0
    %1402 = vmatprep.subr.mxu0 0.0
    %1403 = vmatpush1.xpose.msra.mxu0 0.0
    %1404 = vmatprep.subr.mxu0 0.0
    %1405 = vmatpush1.xpose.msra.mxu0 0.0
    %1406 = vmatprep.subr.mxu0 0.0
    %1407 = vmatpush1.xpose.msra.mxu0 0.0
    %1408 = vmatprep.subr.mxu0 0.0
    %1409 = vmatpush1.xpose.msra.mxu0 0.0
    %1410 = vmatprep.subr.mxu0 0.0
    %1411 = vmatpush1.xpose.msra.mxu0 %v1380
    %1412 = vmatprep.subr.mxu0 0.0
    %1413 = vmatpush1.xpose.msra.mxu0 %v1378
    %1414 = vmatprep.subr.mxu0 0.0
    %1415 = vmatpush2.xpose.msra.mxu0 0.0
    %1416 = vmatprep.subr.mxu0 0.0
    %1417 = vmatpush2.xpose.msra.mxu0 0.0
    %1418 = vmatprep.subr.mxu0 0.0
    %1419 = vmatpush2.xpose.msra.mxu0 0.0
    %1420 = vmatprep.subr.mxu0 0.0
    %1421 = vmatpush2.xpose.msra.mxu0 0.0
    %1422 = vmatprep.subr.mxu0 0.0
    %1423 = vmatpush2.xpose.msra.mxu0 0.0
    %1424 = vmatprep.subr.mxu0 0.0
    %1425 = vmatpush2.xpose.msra.mxu0 0.0
    %1426 = vmatprep.subr.mxu0 0.0
    %1427 = vmatpush2.xpose.msra.mxu0 0.0
    %1428 = vmatprep.subr.mxu0 0.0
    %1429 = vmatpush2.xpose.msra.mxu0 0.0
    %1430 = vmatprep.subr.mxu0 0.0
    %1431 = vmatpush2.xpose.msra.mxu0 0.0
    %1432 = vmatprep.subr.mxu0 0.0
    %1433 = vmatpush2.xpose.msra.mxu0 0.0
    %1434 = vmatprep.subr.mxu0 0.0
    %1435 = vmatpush2.xpose.msra.mxu0 0.0
    %1436 = vmatprep.subr.mxu0 0.0
    %1437 = vmatpush2.xpose.msra.mxu0 0.0
    %1438 = vmatprep.subr.mxu0 0.0
    %1439 = vmatpush2.xpose.msra.mxu0 0.0
    %1440 = vmatprep.subr.mxu0 0.0
    %1441 = vmatpush2.xpose.msra.mxu0 0.0
    %1442 = vmatprep.subr.mxu0 0.0
    %1443 = vmatpush2.xpose.msra.mxu0 0.0
    %1444 = vmatprep.subr.mxu0 0.0
    %1445 = vmatpush2.xpose.msra.mxu0 0.0
    %1446 = vmatprep.mubr.f32.mxu0 0.0
    %1447 = vmatmul.mubr.f32.gmra.mxu0 %v1374
    %v1448 = vpop.f32.mrf.mxu0
    %v1449 = vadd.f32 %v54, %v1448
    %v1450 = vpop.f32.mrf.mxu0
    %1451 = vmatprep.mubr.f32.mxu0 0.0
    %1452 = vmatmul.mubr.f32.gmra.mxu0 %v1376
    %v1453 = vpop.f32.mrf.mxu0
    %v1454 = vadd.f32 %v55, %v1453
    %v1455 = vpop.f32.mrf.mxu0
    %1456 = vdwg.mxu0
    %v1457 = vsel %vm206, %v1449, -inf
    %1458 = vmax.xlane.f32.xlu0 %v1457
    %v1459 = vpop.xlane.xlu0 %1458
    %v1460 = vsel %vm206, %v1454, -inf
    %1461 = vmax.xlane.f32.xlu0 %v1460
    %v1462 = vpop.xlane.xlu0 %1461
    %v1463 = vsub.f32 %v1449, %v1459
    %v1464 = vsub.f32 %v1454, %v1462
    %v1465 = vmul.f32 %v1463, 1.442695
    %v1466 = vpow.pop %v1465
    %v1467 = vmul.f32 %v1464, 1.442695
    %v1468 = vpow.pop %v1467
    %v1469 = vsel %vm206, %v1466, 0.0
    %1470 = vadd.xlane.f32.xlu0 %v1469
    %v1471 = vpop.xlane.xlu0 %1470
    %v1472 = vsel %vm206, %v1468, 0.0
    %1473 = vadd.xlane.f32.xlu0 %v1472
    %v1474 = vpop.xlane.xlu0 %1473
    %v1475 = vrcp.pop %v1471
    %v1476 = vrcp.pop %v1474
    %v1477 = vmul.f32 %v1466, %v1475
    %v1478 = vmul.f32 %v1468, %v1476
    %1479 = vrot.lane.b32.xlu0 %v1155, 48
    %v1480 = vpop.permute.xlu0 %1479
    %1481 = vrot.lane.b32.xlu0 %v1160, 48
    %v1482 = vpop.permute.xlu0 %1481
    %v1486 = vsel %vm206, %v1477, 0
    %v1489 = vsel %vm206, %v1478, 0
    %1491 = vmatprep.subr.mxu0 0.0
    %1492 = vmatpush1.msra.mxu0 0.0
    %1493 = vmatprep.subr.mxu0 0.0
    %1494 = vmatpush1.msra.mxu0 0.0
    %1495 = vmatprep.subr.mxu0 0.0
    %1496 = vmatpush1.msra.mxu0 0.0
    %1497 = vmatprep.subr.mxu0 0.0
    %1498 = vmatpush1.msra.mxu0 0.0
    %1499 = vmatprep.subr.mxu0 0.0
    %1500 = vmatpush1.msra.mxu0 0.0
    %1501 = vmatprep.subr.mxu0 0.0
    %1502 = vmatpush1.msra.mxu0 0.0
    %1503 = vmatprep.subr.mxu0 0.0
    %1504 = vmatpush1.msra.mxu0 0.0
    %1505 = vmatprep.subr.mxu0 0.0
    %1506 = vmatpush1.msra.mxu0 0.0
    %1507 = vmatprep.subr.mxu0 0.0
    %1508 = vmatpush1.msra.mxu0 0.0
    %1509 = vmatprep.subr.mxu0 0.0
    %1510 = vmatpush1.msra.mxu0 0.0
    %1511 = vmatprep.subr.mxu0 0.0
    %1512 = vmatpush1.msra.mxu0 0.0
    %1513 = vmatprep.subr.mxu0 0.0
    %1514 = vmatpush1.msra.mxu0 0.0
    %1515 = vmatprep.subr.mxu0 0.0
    %1516 = vmatpush1.msra.mxu0 0.0
    %1517 = vmatprep.subr.mxu0 0.0
    %1518 = vmatpush1.msra.mxu0 0.0
    %1519 = vmatprep.subr.mxu0 0.0
    %1520 = vmatpush1.msra.mxu0 %v1482
    %1521 = vmatprep.subr.mxu0 0.0
    %1522 = vmatpush1.msra.mxu0 %v1480
    %1523 = vmatprep.subr.mxu0 0.0
    %1524 = vmatpush2.msra.mxu0 0.0
    %1525 = vmatprep.subr.mxu0 0.0
    %1526 = vmatpush2.msra.mxu0 0.0
    %1527 = vmatprep.subr.mxu0 0.0
    %1528 = vmatpush2.msra.mxu0 0.0
    %1529 = vmatprep.subr.mxu0 0.0
    %1530 = vmatpush2.msra.mxu0 0.0
    %1531 = vmatprep.subr.mxu0 0.0
    %1532 = vmatpush2.msra.mxu0 0.0
    %1533 = vmatprep.subr.mxu0 0.0
    %1534 = vmatpush2.msra.mxu0 0.0
    %1535 = vmatprep.subr.mxu0 0.0
    %1536 = vmatpush2.msra.mxu0 0.0
    %1537 = vmatprep.subr.mxu0 0.0
    %1538 = vmatpush2.msra.mxu0 0.0
    %1539 = vmatprep.subr.mxu0 0.0
    %1540 = vmatpush2.msra.mxu0 0.0
    %1541 = vmatprep.subr.mxu0 0.0
    %1542 = vmatpush2.msra.mxu0 0.0
    %1543 = vmatprep.subr.mxu0 0.0
    %1544 = vmatpush2.msra.mxu0 0.0
    %1545 = vmatprep.subr.mxu0 0.0
    %1546 = vmatpush2.msra.mxu0 0.0
    %1547 = vmatprep.subr.mxu0 0.0
    %1548 = vmatpush2.msra.mxu0 0.0
    %1549 = vmatprep.subr.mxu0 0.0
    %1550 = vmatpush2.msra.mxu0 0.0
    %1551 = vmatprep.subr.mxu0 0.0
    %1552 = vmatpush2.msra.mxu0 0.0
    %1553 = vmatprep.subr.mxu0 0.0
    %1554 = vmatpush2.msra.mxu0 0.0
    %1555 = vmatprep.mubr.f32.mxu0 0.0
    %1556 = vmatmul.mubr.f32.gmra.mxu0 %v1486
    %v1557 = vpop.f32.mrf.mxu0
    %v1558 = vadd.f32 0.0, %v1557
    %v1559 = vpop.f32.mrf.mxu0
    %1560 = vmatprep.mubr.f32.mxu0 0.0
    %1561 = vmatmul.mubr.f32.gmra.mxu0 %v1489
    %v1562 = vpop.f32.mrf.mxu0
    %v1563 = vadd.f32 0.0, %v1562
    %v1564 = vpop.f32.mrf.mxu0
    %1565 = vdwg.mxu0
    %v1567 = vsel %vm206, %v1558, 0
    %v1570 = vsel %vm206, %v1563, 0
    %1572 = vmatprep.subr.mxu0 0.0
    %1573 = vmatpush1.msra.mxu0 0.0
    %1574 = vmatprep.subr.mxu0 0.0
    %1575 = vmatpush1.msra.mxu0 0.0
    %1576 = vmatprep.subr.mxu0 0.0
    %1577 = vmatpush1.msra.mxu0 0.0
    %1578 = vmatprep.subr.mxu0 0.0
    %1579 = vmatpush1.msra.mxu0 0.0
    %1580 = vmatprep.subr.mxu0 0.0
    %1581 = vmatpush1.msra.mxu0 0.0
    %1582 = vmatprep.subr.mxu0 0.0
    %1583 = vmatpush1.msra.mxu0 0.0
    %1584 = vmatprep.subr.mxu0 0.0
    %1585 = vmatpush1.msra.mxu0 0.0
    %1586 = vmatprep.subr.mxu0 0.0
    %1587 = vmatpush1.msra.mxu0 0.0
    %1588 = vmatprep.subr.mxu0 0.0
    %1589 = vmatpush1.msra.mxu0 0.0
    %1590 = vmatprep.subr.mxu0 0.0
    %1591 = vmatpush1.msra.mxu0 0.0
    %1592 = vmatprep.subr.mxu0 0.0
    %1593 = vmatpush1.msra.mxu0 0.0
    %1594 = vmatprep.subr.mxu0 0.0
    %1595 = vmatpush1.msra.mxu0 0.0
    %1596 = vmatprep.subr.mxu0 0.0
    %1597 = vmatpush1.msra.mxu0 0.0
    %1598 = vmatprep.subr.mxu0 0.0
    %1599 = vmatpush1.msra.mxu0 0.0
    %1600 = vmatprep.subr.mxu0 0.0
    %1601 = vmatpush1.msra.mxu0 %v1167
    %1602 = vmatprep.subr.mxu0 0.0
    %1603 = vmatpush1.msra.mxu0 %v1166
    %1604 = vmatprep.subr.mxu0 0.0
    %1605 = vmatpush2.msra.mxu0 0.0
    %1606 = vmatprep.subr.mxu0 0.0
    %1607 = vmatpush2.msra.mxu0 0.0
    %1608 = vmatprep.subr.mxu0 0.0
    %1609 = vmatpush2.msra.mxu0 0.0
    %1610 = vmatprep.subr.mxu0 0.0
    %1611 = vmatpush2.msra.mxu0 0.0
    %1612 = vmatprep.subr.mxu0 0.0
    %1613 = vmatpush2.msra.mxu0 0.0
    %1614 = vmatprep.subr.mxu0 0.0
    %1615 = vmatpush2.msra.mxu0 0.0
    %1616 = vmatprep.subr.mxu0 0.0
    %1617 = vmatpush2.msra.mxu0 0.0
    %1618 = vmatprep.subr.mxu0 0.0
    %1619 = vmatpush2.msra.mxu0 0.0
    %1620 = vmatprep.subr.mxu0 0.0
    %1621 = vmatpush2.msra.mxu0 0.0
    %1622 = vmatprep.subr.mxu0 0.0
    %1623 = vmatpush2.msra.mxu0 0.0
    %1624 = vmatprep.subr.mxu0 0.0
    %1625 = vmatpush2.msra.mxu0 0.0
    %1626 = vmatprep.subr.mxu0 0.0
    %1627 = vmatpush2.msra.mxu0 0.0
    %1628 = vmatprep.subr.mxu0 0.0
    %1629 = vmatpush2.msra.mxu0 0.0
    %1630 = vmatprep.subr.mxu0 0.0
    %1631 = vmatpush2.msra.mxu0 0.0
    %1632 = vmatprep.subr.mxu0 0.0
    %1633 = vmatpush2.msra.mxu0 0.0
    %1634 = vmatprep.subr.mxu0 0.0
    %1635 = vmatpush2.msra.mxu0 0.0
    %1636 = vmatprep.mubr.f32.mxu0 0.0
    %1637 = vmatmul.mubr.f32.gmra.mxu0 %v1567
    %v1638 = vpop.f32.mrf.mxu0
    %v1639 = vadd.f32 0.0, %v1638
    %v1640 = vpop.f32.mrf.mxu0
    %1641 = vmatprep.mubr.f32.mxu0 0.0
    %1642 = vmatmul.mubr.f32.gmra.mxu0 %v1570
    %v1643 = vpop.f32.mrf.mxu0
    %v1644 = vadd.f32 0.0, %v1643
    %v1645 = vpop.f32.mrf.mxu0
    %1646 = vdwg.mxu0
    %v1648 = vsel %vm206, %v1358, 0
    %v1651 = vsel %vm206, %v1363, 0
    %1653 = vmatprep.subr.mxu0 0.0
    %1654 = vmatpush1.msra.mxu0 0.0
    %1655 = vmatprep.subr.mxu0 0.0
    %1656 = vmatpush1.msra.mxu0 0.0
    %1657 = vmatprep.subr.mxu0 0.0
    %1658 = vmatpush1.msra.mxu0 0.0
    %1659 = vmatprep.subr.mxu0 0.0
    %1660 = vmatpush1.msra.mxu0 0.0
    %1661 = vmatprep.subr.mxu0 0.0
    %1662 = vmatpush1.msra.mxu0 0.0
    %1663 = vmatprep.subr.mxu0 0.0
    %1664 = vmatpush1.msra.mxu0 0.0
    %1665 = vmatprep.subr.mxu0 0.0
    %1666 = vmatpush1.msra.mxu0 0.0
    %1667 = vmatprep.subr.mxu0 0.0
    %1668 = vmatpush1.msra.mxu0 0.0
    %1669 = vmatprep.subr.mxu0 0.0
    %1670 = vmatpush1.msra.mxu0 0.0
    %1671 = vmatprep.subr.mxu0 0.0
    %1672 = vmatpush1.msra.mxu0 0.0
    %1673 = vmatprep.subr.mxu0 0.0
    %1674 = vmatpush1.msra.mxu0 0.0
    %1675 = vmatprep.subr.mxu0 0.0
    %1676 = vmatpush1.msra.mxu0 0.0
    %1677 = vmatprep.subr.mxu0 0.0
    %1678 = vmatpush1.msra.mxu0 0.0
    %1679 = vmatprep.subr.mxu0 0.0
    %1680 = vmatpush1.msra.mxu0 0.0
    %1681 = vmatprep.subr.mxu0 0.0
    %1682 = vmatpush1.msra.mxu0 %v1165
    %1683 = vmatprep.subr.mxu0 0.0
    %1684 = vmatpush1.msra.mxu0 %v1164
    %1685 = vmatprep.subr.mxu0 0.0
    %1686 = vmatpush2.msra.mxu0 0.0
    %1687 = vmatprep.subr.mxu0 0.0
    %1688 = vmatpush2.msra.mxu0 0.0
    %1689 = vmatprep.subr.mxu0 0.0
    %1690 = vmatpush2.msra.mxu0 0.0
    %1691 = vmatprep.subr.mxu0 0.0
    %1692 = vmatpush2.msra.mxu0 0.0
    %1693 = vmatprep.subr.mxu0 0.0
    %1694 = vmatpush2.msra.mxu0 0.0
    %1695 = vmatprep.subr.mxu0 0.0
    %1696 = vmatpush2.msra.mxu0 0.0
    %1697 = vmatprep.subr.mxu0 0.0
    %1698 = vmatpush2.msra.mxu0 0.0
    %1699 = vmatprep.subr.mxu0 0.0
    %1700 = vmatpush2.msra.mxu0 0.0
    %1701 = vmatprep.subr.mxu0 0.0
    %1702 = vmatpush2.msra.mxu0 0.0
    %1703 = vmatprep.subr.mxu0 0.0
    %1704 = vmatpush2.msra.mxu0 0.0
    %1705 = vmatprep.subr.mxu0 0.0
    %1706 = vmatpush2.msra.mxu0 0.0
    %1707 = vmatprep.subr.mxu0 0.0
    %1708 = vmatpush2.msra.mxu0 0.0
    %1709 = vmatprep.subr.mxu0 0.0
    %1710 = vmatpush2.msra.mxu0 0.0
    %1711 = vmatprep.subr.mxu0 0.0
    %1712 = vmatpush2.msra.mxu0 0.0
    %1713 = vmatprep.subr.mxu0 0.0
    %1714 = vmatpush2.msra.mxu0 0.0
    %1715 = vmatprep.subr.mxu0 0.0
    %1716 = vmatpush2.msra.mxu0 0.0
    %1717 = vmatprep.mubr.f32.mxu0 0.0
    %1718 = vmatmul.mubr.f32.gmra.mxu0 %v1648
    %v1719 = vpop.f32.mrf.mxu0
    %v1720 = vadd.f32 %v1639, %v1719
    %v1721 = vpop.f32.mrf.mxu0
    %1722 = vmatprep.mubr.f32.mxu0 0.0
    %1723 = vmatmul.mubr.f32.gmra.mxu0 %v1651
    %v1724 = vpop.f32.mrf.mxu0
    %v1725 = vadd.f32 %v1644, %v1724
    %v1726 = vpop.f32.mrf.mxu0
    %1727 = vdwg.mxu0
    %s1728 = scalar_lea.vmem %s7, 1
    %v1729 = vld [vmem:[%s1728] sm:$0x1]
    %v1731 = vlaneseq
    %v1732 = vshrl.u32 %v1731, 7
    %v1733 = vsub.s32 0, %v1732
    %v1734 = vrot.slane %v1729, %v1733
    %v1736 = vadd.f32 %v1720, %v1734
    %v1737 = vadd.f32 %v1725, %v1734
    %v1738 = vadd.f32 %v1736, %v1067
    %v1739 = vadd.f32 %v1737, %v1068
    %s1740 = scalar_lea.vmem %s8, 1
    %v1741 = vld [vmem:[%s1740] sm:$0x1]
    %s1742 = scalar_lea.vmem %s9, 1
    %v1743 = vld [vmem:[%s1742] sm:$0x1]
    %v1744 = vsel %vm60, %v1738, 0.0
    %1745 = vadd.xlane.f32.xlu0 %v1744
    %v1746 = vpop.xlane.xlu0 %1745
    %v1747 = vsel %vm60, %v1739, 0.0
    %1748 = vadd.xlane.f32.xlu0 %v1747
    %v1749 = vpop.xlane.xlu0 %1748
    %v1750 = vmul.f32 %v1746, %v67
    %v1751 = vmul.f32 %v1749, %v67
    %v1752 = vsub.f32 %v1738, %v1750
    %v1753 = vsub.f32 %v1739, %v1751
    %v1754 = vmul.f32 %v1752, %v1752
    %v1755 = vmul.f32 %v1753, %v1753
    %v1756 = vsel %vm60, %v1754, 0.0
    %1757 = vadd.xlane.f32.xlu0 %v1756
    %v1758 = vpop.xlane.xlu0 %1757
    %v1759 = vsel %vm60, %v1755, 0.0
    %1760 = vadd.xlane.f32.xlu0 %v1759
    %v1761 = vpop.xlane.xlu0 %1760
    %v1762 = vmul.f32 %v1758, %v67
    %v1763 = vmul.f32 %v1761, %v67
    %v1764 = vadd.f32 %v1762, 1e-12
    %v1765 = vadd.f32 %v1763, 1e-12
    %v1766 = vrsqrt.pop %v1764
    %v1767 = vrsqrt.pop %v1765
    %v1768 = vmul.f32 %v1752, %v1766
    %v1769 = vmul.f32 %v1753, %v1767
    %v1771 = vlaneseq
    %v1772 = vshrl.u32 %v1771, 7
    %v1773 = vsub.s32 0, %v1772
    %v1774 = vrot.slane %v1741, %v1773
    %v1776 = vmul.f32 %v1768, %v1774
    %v1777 = vmul.f32 %v1769, %v1774
    %v1779 = vlaneseq
    %v1780 = vshrl.u32 %v1779, 7
    %v1781 = vsub.s32 0, %v1780
    %v1782 = vrot.slane %v1743, %v1781
    %v1784 = vadd.f32 %v1776, %v1782
    %v1785 = vadd.f32 %v1777, %v1782
    %s1786 = scalar_lea.vmem %s10, 32
    %v1787 = vld [vmem:[%s1786] sm:$0xff]
    %v1788 = vld [vmem:[%s1786 + $0x8] sm:$0xff]
    %v1789 = vld [vmem:[%s1786 + $0x10] sm:$0xff]
    %v1790 = vld [vmem:[%s1786 + $0x18] sm:$0xff]
    %s1791 = scalar_lea.vmem %s11, 1
    %v1792 = vld [vmem:[%s1791] sm:$0x1]
    %v1794 = vlaneseq
    %v1795 = vshrl.u32 %v1794, 7
    %v1796 = vsub.s32 0, %v1795
    %v1797 = vrot.slane %v1792, %v1796
    %v1800 = vsel %vm60, %v1784, 0
    %v1803 = vsel %vm60, %v1785, 0
    %1805 = vmatprep.subr.mxu0 0.0
    %1806 = vmatpush1.msra.mxu0 0.0
    %1807 = vmatprep.subr.mxu0 0.0
    %1808 = vmatpush1.msra.mxu0 0.0
    %1809 = vmatprep.subr.mxu0 0.0
    %1810 = vmatpush1.msra.mxu0 0.0
    %1811 = vmatprep.subr.mxu0 0.0
    %1812 = vmatpush1.msra.mxu0 0.0
    %1813 = vmatprep.subr.mxu0 0.0
    %1814 = vmatpush1.msra.mxu0 0.0
    %1815 = vmatprep.subr.mxu0 0.0
    %1816 = vmatpush1.msra.mxu0 0.0
    %1817 = vmatprep.subr.mxu0 0.0
    %1818 = vmatpush1.msra.mxu0 0.0
    %1819 = vmatprep.subr.mxu0 0.0
    %1820 = vmatpush1.msra.mxu0 0.0
    %1821 = vmatprep.subr.mxu0 0.0
    %1822 = vmatpush1.msra.mxu0 0.0
    %1823 = vmatprep.subr.mxu0 0.0
    %1824 = vmatpush1.msra.mxu0 0.0
    %1825 = vmatprep.subr.mxu0 0.0
    %1826 = vmatpush1.msra.mxu0 0.0
    %1827 = vmatprep.subr.mxu0 0.0
    %1828 = vmatpush1.msra.mxu0 0.0
    %1829 = vmatprep.subr.mxu0 0.0
    %1830 = vmatpush1.msra.mxu0 %v1790
    %1831 = vmatprep.subr.mxu0 0.0
    %1832 = vmatpush1.msra.mxu0 %v1789
    %1833 = vmatprep.subr.mxu0 0.0
    %1834 = vmatpush1.msra.mxu0 %v1788
    %1835 = vmatprep.subr.mxu0 0.0
    %1836 = vmatpush1.msra.mxu0 %v1787
    %1837 = vmatprep.subr.mxu0 0.0
    %1838 = vmatpush2.msra.mxu0 0.0
    %1839 = vmatprep.subr.mxu0 0.0
    %1840 = vmatpush2.msra.mxu0 0.0
    %1841 = vmatprep.subr.mxu0 0.0
    %1842 = vmatpush2.msra.mxu0 0.0
    %1843 = vmatprep.subr.mxu0 0.0
    %1844 = vmatpush2.msra.mxu0 0.0
    %1845 = vmatprep.subr.mxu0 0.0
    %1846 = vmatpush2.msra.mxu0 0.0
    %1847 = vmatprep.subr.mxu0 0.0
    %1848 = vmatpush2.msra.mxu0 0.0
    %1849 = vmatprep.subr.mxu0 0.0
    %1850 = vmatpush2.msra.mxu0 0.0
    %1851 = vmatprep.subr.mxu0 0.0
    %1852 = vmatpush2.msra.mxu0 0.0
    %1853 = vmatprep.subr.mxu0 0.0
    %1854 = vmatpush2.msra.mxu0 0.0
    %1855 = vmatprep.subr.mxu0 0.0
    %1856 = vmatpush2.msra.mxu0 0.0
    %1857 = vmatprep.subr.mxu0 0.0
    %1858 = vmatpush2.msra.mxu0 0.0
    %1859 = vmatprep.subr.mxu0 0.0
    %1860 = vmatpush2.msra.mxu0 0.0
    %1861 = vmatprep.subr.mxu0 0.0
    %1862 = vmatpush2.msra.mxu0 0.0
    %1863 = vmatprep.subr.mxu0 0.0
    %1864 = vmatpush2.msra.mxu0 0.0
    %1865 = vmatprep.subr.mxu0 0.0
    %1866 = vmatpush2.msra.mxu0 0.0
    %1867 = vmatprep.subr.mxu0 0.0
    %1868 = vmatpush2.msra.mxu0 0.0
    %1869 = vmatprep.mubr.f32.mxu0 0.0
    %1870 = vmatmul.mubr.f32.gmra.mxu0 %v1800
    %v1871 = vpop.f32.mrf.mxu0
    %v1872 = vadd.f32 %v1797, %v1871
    %v1873 = vpop.f32.mrf.mxu0
    %1874 = vmatprep.mubr.f32.mxu0 0.0
    %1875 = vmatmul.mubr.f32.gmra.mxu0 %v1803
    %v1876 = vpop.f32.mrf.mxu0
    %v1877 = vadd.f32 %v1797, %v1876
    %v1878 = vpop.f32.mrf.mxu0
    %1879 = vdwg.mxu0
    %v1880 = vmul.f32 %v1872, %v1872
    %v1881 = vmul.f32 %v1877, %v1877
    %v1882 = vmul.f32 %v1872, %v1880
    %v1883 = vmul.f32 %v1877, %v1881
    %v1884 = vmul.f32 %v1882, 0.044715
    %v1885 = vmul.f32 %v1883, 0.044715
    %v1886 = vadd.f32 %v1872, %v1884
    %v1887 = vadd.f32 %v1877, %v1885
    %v1888 = vmul.f32 %v1886, 0.7978846
    %v1889 = vmul.f32 %v1887, 0.7978846
    %v1890 = vtanh.pop %v1888
    %v1891 = vtanh.pop %v1889
    %v1892 = vadd.f32 %v1890, 1.0
    %v1893 = vadd.f32 %v1891, 1.0
    %v1894 = vmul.f32 %v1892, 0.5
    %v1895 = vmul.f32 %v1893, 0.5
    %v1896 = vmul.f32 %v1872, %v1894
    %v1897 = vmul.f32 %v1877, %v1895
    %s1898 = scalar_lea.vmem %s12, 64
    %v1899 = vld [vmem:[%s1898] sm:$0xff]
    %v1900 = vld [vmem:[%s1898 + $0x8] sm:$0xff]
    %v1901 = vld [vmem:[%s1898 + $0x10] sm:$0xff]
    %v1902 = vld [vmem:[%s1898 + $0x18] sm:$0xff]
    %v1903 = vld [vmem:[%s1898 + $0x20] sm:$0xff]
    %v1904 = vld [vmem:[%s1898 + $0x28] sm:$0xff]
    %v1905 = vld [vmem:[%s1898 + $0x30] sm:$0xff]
    %v1906 = vld [vmem:[%s1898 + $0x38] sm:$0xff]
    %s1907 = scalar_lea.vmem %s13, 1
    %v1908 = vld [vmem:[%s1907] sm:$0x1]
    %v1910 = vlaneseq
    %v1911 = vshrl.u32 %v1910, 7
    %v1912 = vsub.s32 0, %v1911
    %v1913 = vrot.slane %v1908, %v1912
    %v1916 = vsel %vm941, %v1896, 0
    %v1919 = vsel %vm941, %v1897, 0
    %1921 = vmatprep.subr.mxu0 0.0
    %1922 = vmatpush1.msra.mxu0 0.0
    %1923 = vmatprep.subr.mxu0 0.0
    %1924 = vmatpush1.msra.mxu0 0.0
    %1925 = vmatprep.subr.mxu0 0.0
    %1926 = vmatpush1.msra.mxu0 0.0
    %1927 = vmatprep.subr.mxu0 0.0
    %1928 = vmatpush1.msra.mxu0 0.0
    %1929 = vmatprep.subr.mxu0 0.0
    %1930 = vmatpush1.msra.mxu0 0.0
    %1931 = vmatprep.subr.mxu0 0.0
    %1932 = vmatpush1.msra.mxu0 0.0
    %1933 = vmatprep.subr.mxu0 0.0
    %1934 = vmatpush1.msra.mxu0 0.0
    %1935 = vmatprep.subr.mxu0 0.0
    %1936 = vmatpush1.msra.mxu0 0.0
    %1937 = vmatprep.subr.mxu0 0.0
    %1938 = vmatpush1.msra.mxu0 %v1906
    %1939 = vmatprep.subr.mxu0 0.0
    %1940 = vmatpush1.msra.mxu0 %v1905
    %1941 = vmatprep.subr.mxu0 0.0
    %1942 = vmatpush1.msra.mxu0 %v1904
    %1943 = vmatprep.subr.mxu0 0.0
    %1944 = vmatpush1.msra.mxu0 %v1903
    %1945 = vmatprep.subr.mxu0 0.0
    %1946 = vmatpush1.msra.mxu0 %v1902
    %1947 = vmatprep.subr.mxu0 0.0
    %1948 = vmatpush1.msra.mxu0 %v1901
    %1949 = vmatprep.subr.mxu0 0.0
    %1950 = vmatpush1.msra.mxu0 %v1900
    %1951 = vmatprep.subr.mxu0 0.0
    %1952 = vmatpush1.msra.mxu0 %v1899
    %1953 = vmatprep.subr.mxu0 0.0
    %1954 = vmatpush2.msra.mxu0 0.0
    %1955 = vmatprep.subr.mxu0 0.0
    %1956 = vmatpush2.msra.mxu0 0.0
    %1957 = vmatprep.subr.mxu0 0.0
    %1958 = vmatpush2.msra.mxu0 0.0
    %1959 = vmatprep.subr.mxu0 0.0
    %1960 = vmatpush2.msra.mxu0 0.0
    %1961 = vmatprep.subr.mxu0 0.0
    %1962 = vmatpush2.msra.mxu0 0.0
    %1963 = vmatprep.subr.mxu0 0.0
    %1964 = vmatpush2.msra.mxu0 0.0
    %1965 = vmatprep.subr.mxu0 0.0
    %1966 = vmatpush2.msra.mxu0 0.0
    %1967 = vmatprep.subr.mxu0 0.0
    %1968 = vmatpush2.msra.mxu0 0.0
    %1969 = vmatprep.subr.mxu0 0.0
    %1970 = vmatpush2.msra.mxu0 0.0
    %1971 = vmatprep.subr.mxu0 0.0
    %1972 = vmatpush2.msra.mxu0 0.0
    %1973 = vmatprep.subr.mxu0 0.0
    %1974 = vmatpush2.msra.mxu0 0.0
    %1975 = vmatprep.subr.mxu0 0.0
    %1976 = vmatpush2.msra.mxu0 0.0
    %1977 = vmatprep.subr.mxu0 0.0
    %1978 = vmatpush2.msra.mxu0 0.0
    %1979 = vmatprep.subr.mxu0 0.0
    %1980 = vmatpush2.msra.mxu0 0.0
    %1981 = vmatprep.subr.mxu0 0.0
    %1982 = vmatpush2.msra.mxu0 0.0
    %1983 = vmatprep.subr.mxu0 0.0
    %1984 = vmatpush2.msra.mxu0 0.0
    %1985 = vmatprep.mubr.f32.mxu0 0.0
    %1986 = vmatmul.mubr.f32.gmra.mxu0 %v1916
    %v1987 = vpop.f32.mrf.mxu0
    %v1988 = vadd.f32 %v1913, %v1987
    %v1989 = vpop.f32.mrf.mxu0
    %1990 = vmatprep.mubr.f32.mxu0 0.0
    %1991 = vmatmul.mubr.f32.gmra.mxu0 %v1919
    %v1992 = vpop.f32.mrf.mxu0
    %v1993 = vadd.f32 %v1913, %v1992
    %v1994 = vpop.f32.mrf.mxu0
    %1995 = vdwg.mxu0
    %v1996 = vadd.f32 %v1988, %v1784
    %v1997 = vadd.f32 %v1993, %v1785
    %s1998 = scalar_lea.vmem %s14, 1
    %v1999 = vld [vmem:[%s1998] sm:$0x1]
    %s2000 = scalar_lea.vmem %s15, 1
    %v2001 = vld [vmem:[%s2000] sm:$0x1]
    %v2002 = vsel %vm60, %v1996, 0.0
    %2003 = vadd.xlane.f32.xlu0 %v2002
    %v2004 = vpop.xlane.xlu0 %2003
    %v2005 = vsel %vm60, %v1997, 0.0
    %2006 = vadd.xlane.f32.xlu0 %v2005
    %v2007 = vpop.xlane.xlu0 %2006
    %v2008 = vmul.f32 %v2004, %v67
    %v2009 = vmul.f32 %v2007, %v67
    %v2010 = vsub.f32 %v1996, %v2008
    %v2011 = vsub.f32 %v1997, %v2009
    %v2012 = vmul.f32 %v2010, %v2010
    %v2013 = vmul.f32 %v2011, %v2011
    %v2014 = vsel %vm60, %v2012, 0.0
    %2015 = vadd.xlane.f32.xlu0 %v2014
    %v2016 = vpop.xlane.xlu0 %2015
    %v2017 = vsel %vm60, %v2013, 0.0
    %2018 = vadd.xlane.f32.xlu0 %v2017
    %v2019 = vpop.xlane.xlu0 %2018
    %v2020 = vmul.f32 %v2016, %v67
    %v2021 = vmul.f32 %v2019, %v67
    %v2022 = vadd.f32 %v2020, 1e-12
    %v2023 = vadd.f32 %v2021, 1e-12
    %v2024 = vrsqrt.pop %v2022
    %v2025 = vrsqrt.pop %v2023
    %v2026 = vmul.f32 %v2010, %v2024
    %v2027 = vmul.f32 %v2011, %v2025
    %v2029 = vlaneseq
    %v2030 = vshrl.u32 %v2029, 7
    %v2031 = vsub.s32 0, %v2030
    %v2032 = vrot.slane %v1999, %v2031
    %v2034 = vmul.f32 %v2026, %v2032
    %v2035 = vmul.f32 %v2027, %v2032
    %v2037 = vlaneseq
    %v2038 = vshrl.u32 %v2037, 7
    %v2039 = vsub.s32 0, %v2038
    %v2040 = vrot.slane %v2001, %v2039
    %v2042 = vadd.f32 %v2034, %v2040
    %v2043 = vadd.f32 %v2035, %v2040
    %vm2044 = vcmask 253952
    %2045 = vst.msk [vmem:[#allocation2] sm:$0x1] %vm2044, %v2042
    %2046 = vst.msk [vmem:[#allocation2 + $0x1] sm:$0x1] %vm2044, %v2043
    // Predicated region
    $region66: #{_bert_encode_impl.1} parent=1 // pred_check
      _
    $region67: #{_bert_encode_impl.1} parent=1 // pred_check_branch
      %2048 = sbr.rel (0) target = $region69
    $region68: #{_bert_encode_impl.1} parent=1 // pred_region
      %s2050 = ssub.s32 32, 32
      %2051 = vsyncadd [#allocation3], %s2050
      %s2053 = sshll.u32 [#allocation2], 4
      %s2054 = int_to_ptr.vmem [resolvable:$true] %s2053
      %2056 = dma.vmem_to_hbm [thread:$0]  %s2054, 32, %s16, [#allocation3]
    $region69: #{_bert_encode_impl.1} parent=1 // pred_fallthru
      _
    // Predicated region
    $region70: #{_bert_encode_impl.1} parent=1 // pred_check
      _
    $region71: #{_bert_encode_impl.1} parent=1 // pred_check_branch
      %2058 = sbr.rel (0) target = $region73
    $region72: #{_bert_encode_impl.1} parent=1 // pred_region
      %2059 = dma.done [#allocation3], 32
    $region73: #{_bert_encode_impl.1} parent=1 // pred_fallthru
      _
    %2060 = vsyncpa [#allocation3], 1

</llo_original>
